<compile_context>
chip_gen: v7x
topology: tpu7x:2x2x1
jax: 0.10.0
libtpu: 0.0.40
codegen_flags: <defaults>
</compile_context>

<pallas_src>
import functools

import jax
import jax.numpy as jnp
from jax.experimental import pallas as pl
from jax.experimental.pallas import tpu as pltpu

LN_EPS = 1e-5  # torch.nn.LayerNorm default

PARAM_ORDER = (
    "wqkv", "bqkv", "wo", "bo",
    "ln1_g", "ln1_b",
    "w1", "b1", "w2", "b2",
    "ln2_g", "ln2_b",
)


def _layernorm(x, g, b):
    mu = jnp.mean(x, axis=-1, keepdims=True)
    var = jnp.mean(jnp.square(x - mu), axis=-1, keepdims=True)
    return (x - mu) * jax.lax.rsqrt(var + LN_EPS) * g + b


def _encoder_stack_kernel(x_ref,
                          wqkv_ref, bqkv_ref, wo_ref, bo_ref,
                          ln1g_ref, ln1b_ref,
                          w1_ref, b1_ref, w2_ref, b2_ref,
                          ln2g_ref, ln2b_ref,
                          o_ref,
                          *, B, S, D, n_heads, d_head):
    layer = pl.program_id(0)

    # Layer 0: seed the VMEM-resident activation block with the input.
    @pl.when(layer == 0)
    def _():
        o_ref[...] = x_ref[...]

    x = o_ref[...]                                  # (M, D) fp32, M = B*S

    # ---- fused QKV projection: one MXU pass, bf16 operands, fp32 accum ----
    qkv = jnp.dot(x.astype(jnp.bfloat16), wqkv_ref[...],
                  preferred_element_type=jnp.float32) + bqkv_ref[...]  # (M, 3D)

    q = qkv[:, :D].reshape(B, S, D)                 # leading-dim split only
    k = qkv[:, D:2 * D].reshape(B, S, D)
    v = qkv[:, 2 * D:].reshape(B, S, D)

    scale = 1.0 / (d_head ** 0.5)
    ctx = []
    # Static unroll over heads (n_heads is small); each stage is batched over
    # B via a single-batch-dim einsum (contract last dims, no .T relayout).
    for h in range(n_heads):
        sl = slice(h * d_head, (h + 1) * d_head)
        qh = q[:, :, sl].astype(jnp.bfloat16)
        kh = k[:, :, sl].astype(jnp.bfloat16)
        vh = v[:, :, sl].astype(jnp.bfloat16)
        s = jnp.einsum("bqd,bkd->bqk", qh, kh,
                       preferred_element_type=jnp.float32) * scale
        s = s - jnp.max(s, axis=-1, keepdims=True)          # fp32 softmax
        p = jnp.exp(s)
        p = p * pl.reciprocal(jnp.sum(p, axis=-1, keepdims=True), approx=True)
        ctx.append(jnp.einsum("bqk,bkd->bqd", p.astype(jnp.bfloat16), vh,
                              preferred_element_type=jnp.float32))
    attn = jnp.concatenate(ctx, axis=-1).reshape(B * S, D)   # (M, D) fp32

    attn = jnp.dot(attn.astype(jnp.bfloat16), wo_ref[...],
                   preferred_element_type=jnp.float32) + bo_ref[...]

    # dropout (eval mode) == identity
    x1 = _layernorm(attn + x, ln1g_ref[...], ln1b_ref[...])

    # ---- feed-forward network: Linear -> ReLU -> Linear ----
    h1 = jnp.dot(x1.astype(jnp.bfloat16), w1_ref[...],
                 preferred_element_type=jnp.float32) + b1_ref[...]
    h1 = jnp.maximum(h1, 0.0)
    ffn = jnp.dot(h1.astype(jnp.bfloat16), w2_ref[...],
                  preferred_element_type=jnp.float32) + b2_ref[...]

    # dropout (eval mode) == identity
    o_ref[...] = _layernorm(ffn + x1, ln2g_ref[...], ln2b_ref[...])


def encoder_forward(x, stacked, *, n_heads, d_head):
    """Encoder.forward: whole layer stack in a single pallas_call.

    x: (B, S, D) float32.  `stacked` holds per-layer params stacked on a
    leading layer axis (matmul weights in bf16, biases / LN params in fp32).
    """
    B, S, D = x.shape
    M = B * S
    L = stacked["wqkv"].shape[0]
    F = stacked["w1"].shape[-1]

    params = [stacked[name] for name in PARAM_ORDER]

    in_specs = [pl.BlockSpec((M, D), lambda l: (0, 0))]          # resident x
    for p in params:
        # Squeeze the layer dim: kernel sees a 2-D ref for layer `l`.
        in_specs.append(
            pl.BlockSpec((None,) + tuple(p.shape[1:]), lambda l: (l, 0, 0)))

    flops_layer = (2 * M * D * 3 * D                 # fused QKV projection
                   + 4 * B * n_heads * S * S * d_head  # scores + PV
                   + 2 * M * D * D                   # output projection
                   + 4 * M * D * F)                  # FFN (two matmuls)
    cost = pl.CostEstimate(
        flops=L * flops_layer,
        transcendentals=L * B * n_heads * S * S,     # softmax exp
        bytes_accessed=2 * int(x.nbytes) + sum(int(p.nbytes) for p in params),
    )

    kernel = functools.partial(_encoder_stack_kernel, B=B, S=S, D=D,
                               n_heads=n_heads, d_head=d_head)

    out = pl.pallas_call(
        kernel,
        out_shape=jax.ShapeDtypeStruct((M, D), jnp.float32),
        grid_spec=pltpu.PrefetchScalarGridSpec(
            num_scalar_prefetch=0,
            grid=(L,),
            in_specs=in_specs,
            out_specs=pl.BlockSpec((M, D), lambda l: (0, 0)),
        ),
        compiler_params=pltpu.CompilerParams(
            # layer axis is a sequential carry (output block revisited)
            dimension_semantics=("arbitrary",)),
        cost_estimate=cost,
    )(x.reshape(M, D), *params)

    return out.reshape(B, S, D)


def init_stacked_params(key, layers_amount, d_model, ffn_d_hidden):
    keys = jax.random.split(key, layers_amount)
    scale = 0.02

    def one_layer(k):
        ks = jax.random.split(k, 6)
        wq = scale * jax.random.normal(ks[0], (d_model, d_model), jnp.float32)
        wk = scale * jax.random.normal(ks[1], (d_model, d_model), jnp.float32)
        wv = scale * jax.random.normal(ks[2], (d_model, d_model), jnp.float32)
        wo = scale * jax.random.normal(ks[3], (d_model, d_model), jnp.float32)
        w1 = scale * jax.random.normal(ks[4], (d_model, ffn_d_hidden),
                                       jnp.float32)
        w2 = scale * jax.random.normal(ks[5], (ffn_d_hidden, d_model),
                                       jnp.float32)
        return {
            "wqkv": jnp.concatenate([wq, wk, wv], axis=1).astype(jnp.bfloat16),
            "bqkv": jnp.zeros((1, 3 * d_model), jnp.float32),
            "wo": wo.astype(jnp.bfloat16),
            "bo": jnp.zeros((1, d_model), jnp.float32),
            "ln1_g": jnp.ones((1, d_model), jnp.float32),
            "ln1_b": jnp.zeros((1, d_model), jnp.float32),
            "w1": w1.astype(jnp.bfloat16),
            "b1": jnp.zeros((1, ffn_d_hidden), jnp.float32),
            "w2": w2.astype(jnp.bfloat16),
            "b2": jnp.zeros((1, d_model), jnp.float32),
            "ln2_g": jnp.ones((1, d_model), jnp.float32),
            "ln2_b": jnp.zeros((1, d_model), jnp.float32),
        }

    per_layer = [one_layer(k) for k in keys]
    return {name: jnp.stack([p[name] for p in per_layer], axis=0)
            for name in PARAM_ORDER}


if __name__ == "__main__":
    # small, module-consistent shapes
    layers_amount = 2
    d_model = 32
    attention_d_head = 8
    n_heads = d_model // attention_d_head
    ffn_d_hidden = 64
    batch = 2
    seq = 8            # <= max_len
    # dropout_prob unused (eval mode -> identity)
    # TODO(synk): training-mode dropout not implemented (forward run in eval mode)

    key = jax.random.PRNGKey(0)
    key_x, key_p = jax.random.split(key)

    x = jax.random.normal(key_x, (batch, seq, d_model), jnp.float32)
    stacked = init_stacked_params(key_p, layers_amount, d_model, ffn_d_hidden)

    out = encoder_forward(x, stacked, n_heads=n_heads, d_head=attention_d_head)
    jax.block_until_ready(out)
    assert out.shape == (batch, seq, d_model)
    print("KERNEL_OK")
</pallas_src>

<mosaic_0001>
module attributes {stable_mosaic.version = 11 : i64} {
  func.func @_encoder_stack_kernel(%arg0: i32, %arg1: memref<16x32xf32, #tpu.memory_space<vmem>>, %arg2: memref<1x32x96xbf16, #tpu.memory_space<vmem>>, %arg3: memref<1x1x96xf32, #tpu.memory_space<vmem>>, %arg4: memref<1x32x32xbf16, #tpu.memory_space<vmem>>, %arg5: memref<1x1x32xf32, #tpu.memory_space<vmem>>, %arg6: memref<1x1x32xf32, #tpu.memory_space<vmem>>, %arg7: memref<1x1x32xf32, #tpu.memory_space<vmem>>, %arg8: memref<1x32x64xbf16, #tpu.memory_space<vmem>>, %arg9: memref<1x1x64xf32, #tpu.memory_space<vmem>>, %arg10: memref<1x64x32xbf16, #tpu.memory_space<vmem>>, %arg11: memref<1x1x32xf32, #tpu.memory_space<vmem>>, %arg12: memref<1x1x32xf32, #tpu.memory_space<vmem>>, %arg13: memref<1x1x32xf32, #tpu.memory_space<vmem>>, %arg14: memref<16x32xf32, #tpu.memory_space<vmem>>) attributes {dimension_semantics = [#tpu.dimension_semantics<arbitrary>], iteration_bounds = array<i64: 2>, scalar_prefetch = 0 : i64, scratch_operands = 0 : i64, tpu.core_type = #tpu.core_type<tc>, window_params = [{pipeline_mode = #tpu.pipeline_mode<synchronous>, transform_indices = @transform_0, window_bounds = array<i64: 16, 32>}, {transform_indices = @transform_1, window_bounds = array<i64: 1, 32, 96>}, {transform_indices = @transform_2, window_bounds = array<i64: 1, 1, 96>}, {transform_indices = @transform_3, window_bounds = array<i64: 1, 32, 32>}, {transform_indices = @transform_4, window_bounds = array<i64: 1, 1, 32>}, {transform_indices = @transform_5, window_bounds = array<i64: 1, 1, 32>}, {transform_indices = @transform_6, window_bounds = array<i64: 1, 1, 32>}, {transform_indices = @transform_7, window_bounds = array<i64: 1, 32, 64>}, {transform_indices = @transform_8, window_bounds = array<i64: 1, 1, 64>}, {transform_indices = @transform_9, window_bounds = array<i64: 1, 64, 32>}, {transform_indices = @transform_10, window_bounds = array<i64: 1, 1, 32>}, {transform_indices = @transform_11, window_bounds = array<i64: 1, 1, 32>}, {transform_indices = @transform_12, window_bounds = array<i64: 1, 1, 32>}, {pipeline_mode = #tpu.pipeline_mode<synchronous>, transform_indices = @transform_13, window_bounds = array<i64: 16, 32>}]} {
    %c0_i32 = arith.constant 0 : i32
    %0 = arith.cmpi eq, %arg0, %c0_i32 : i32
    %1 = arith.extui %0 : i1 to i32
    %c0_i32_0 = arith.constant 0 : i32
    %2 = arith.cmpi ne, %1, %c0_i32_0 : i32
    scf.if %2 {
      %c0_74 = arith.constant 0 : index
      %c0_75 = arith.constant 0 : index
      %185 = vector.load %arg1[%c0_74, %c0_75] : memref<16x32xf32, #tpu.memory_space<vmem>>, vector<16x32xf32>
      %c0_76 = arith.constant 0 : index
      %c0_77 = arith.constant 0 : index
      %186 = vector.load %arg14[%c0_76, %c0_77] : memref<16x32xf32, #tpu.memory_space<vmem>>, vector<16x32xf32>
      tpu.vector_store %arg14[%c0_76, %c0_77], %185 {strides = array<i32>} : memref<16x32xf32, #tpu.memory_space<vmem>>, vector<16x32xf32>,
    } else {
    }
    %c0 = arith.constant 0 : index
    %c0_1 = arith.constant 0 : index
    %3 = vector.load %arg14[%c0, %c0_1] : memref<16x32xf32, #tpu.memory_space<vmem>>, vector<16x32xf32>
    %4 = arith.truncf %3 : vector<16x32xf32> to vector<16x32xbf16>
    %c0_2 = arith.constant 0 : index
    %c0_3 = arith.constant 0 : index
    %c0_4 = arith.constant 0 : index
    %5 = vector.load %arg2[%c0_2, %c0_3, %c0_4] : memref<1x32x96xbf16, #tpu.memory_space<vmem>>, vector<1x32x96xbf16>
    %6 = vector.shape_cast %5 : vector<1x32x96xbf16> to vector<32x96xbf16>
    %cst = arith.constant dense<0.000000e+00> : vector<16x96xf32>
    %7 = tpu.matmul %4, %6, %cst {dimension_numbers = #tpu.dot_dimension_numbers<[1], [0], [0], [1], [0, 0, 1, 1], [], []>} : vector<16x32xbf16>, vector<32x96xbf16>, vector<16x96xf32> -> vector<16x96xf32>
    %c0_5 = arith.constant 0 : index
    %c0_6 = arith.constant 0 : index
    %c0_7 = arith.constant 0 : index
    %8 = vector.load %arg3[%c0_5, %c0_6, %c0_7] : memref<1x1x96xf32, #tpu.memory_space<vmem>>, vector<1x1x96xf32>
    %9 = vector.shape_cast %8 : vector<1x1x96xf32> to vector<1x96xf32>
    %10 = vector.broadcast %9 : vector<1x96xf32> to vector<16x96xf32>
    %11 = arith.addf %7, %10 : vector<16x96xf32>
    %12 = vector.extract_strided_slice %11 {offsets = [0, 0], sizes = [16, 32], strides = [1, 1]} : vector<16x96xf32> to vector<16x32xf32>
    %13 = vector.shape_cast %12 : vector<16x32xf32> to vector<2x8x32xf32>
    %14 = vector.extract_strided_slice %11 {offsets = [0, 32], sizes = [16, 32], strides = [1, 1]} : vector<16x96xf32> to vector<16x32xf32>
    %15 = vector.shape_cast %14 : vector<16x32xf32> to vector<2x8x32xf32>
    %16 = vector.extract_strided_slice %11 {offsets = [0, 64], sizes = [16, 32], strides = [1, 1]} : vector<16x96xf32> to vector<16x32xf32>
    %17 = vector.shape_cast %16 : vector<16x32xf32> to vector<2x8x32xf32>
    %18 = vector.extract_strided_slice %13 {offsets = [0, 0, 0], sizes = [2, 8, 8], strides = [1, 1, 1]} : vector<2x8x32xf32> to vector<2x8x8xf32>
    %19 = arith.truncf %18 : vector<2x8x8xf32> to vector<2x8x8xbf16>
    %20 = vector.extract_strided_slice %15 {offsets = [0, 0, 0], sizes = [2, 8, 8], strides = [1, 1, 1]} : vector<2x8x32xf32> to vector<2x8x8xf32>
    %21 = arith.truncf %20 : vector<2x8x8xf32> to vector<2x8x8xbf16>
    %22 = vector.extract_strided_slice %17 {offsets = [0, 0, 0], sizes = [2, 8, 8], strides = [1, 1, 1]} : vector<2x8x32xf32> to vector<2x8x8xf32>
    %23 = arith.truncf %22 : vector<2x8x8xf32> to vector<2x8x8xbf16>
    "tpu.trace_start"() <{level = 10 : i32, message = "bqd,bkd->bqk"}> : () -> ()
    %cst_8 = arith.constant dense<0.000000e+00> : vector<2x8x8xf32>
    %24 = tpu.matmul %19, %21, %cst_8 {dimension_numbers = #tpu.dot_dimension_numbers<[2], [2], [1], [1], [0, 0, 0, 1, 1, 1], [0], [0]>} : vector<2x8x8xbf16>, vector<2x8x8xbf16>, vector<2x8x8xf32> -> vector<2x8x8xf32>
    "tpu.trace_stop"() : () -> ()
    %cst_9 = arith.constant 0.353553385 : f32
    %25 = vector.broadcast %cst_9 : f32 to vector<2x8x8xf32>
    %26 = arith.mulf %24, %25 : vector<2x8x8xf32>
    %cst_10 = arith.constant dense<0xFF800000> : vector<2x8xf32>
    %27 = vector.multi_reduction <maximumf>, %26, %cst_10 [2] : vector<2x8x8xf32> to vector<2x8xf32>
    %28 = vector.shape_cast %27 : vector<2x8xf32> to vector<2x8x1xf32>
    %29 = vector.broadcast %28 : vector<2x8x1xf32> to vector<2x8x8xf32>
    %30 = arith.subf %26, %29 : vector<2x8x8xf32>
    %31 = math.exp %30 : vector<2x8x8xf32>
    %cst_11 = arith.constant dense<0.000000e+00> : vector<2x8xf32>
    %32 = vector.multi_reduction <add>, %31, %cst_11 [2] : vector<2x8x8xf32> to vector<2x8xf32>
    %33 = vector.shape_cast %32 : vector<2x8xf32> to vector<2x8x1xf32>
    %34 = tpu.reciprocal %33 {approx = true} : vector<2x8x1xf32> -> vector<2x8x1xf32>
    %35 = vector.broadcast %34 : vector<2x8x1xf32> to vector<2x8x8xf32>
    %36 = arith.mulf %31, %35 : vector<2x8x8xf32>
    %37 = arith.truncf %36 : vector<2x8x8xf32> to vector<2x8x8xbf16>
    "tpu.trace_start"() <{level = 10 : i32, message = "bqk,bkd->bqd"}> : () -> ()
    %cst_12 = arith.constant dense<0.000000e+00> : vector<2x8x8xf32>
    %38 = tpu.matmul %37, %23, %cst_12 {dimension_numbers = #tpu.dot_dimension_numbers<[2], [1], [1], [2], [0, 0, 0, 1, 1, 2], [0], [0]>} : vector<2x8x8xbf16>, vector<2x8x8xbf16>, vector<2x8x8xf32> -> vector<2x8x8xf32>
    "tpu.trace_stop"() : () -> ()
    %39 = vector.extract_strided_slice %13 {offsets = [0, 0, 8], sizes = [2, 8, 8], strides = [1, 1, 1]} : vector<2x8x32xf32> to vector<2x8x8xf32>
    %40 = arith.truncf %39 : vector<2x8x8xf32> to vector<2x8x8xbf16>
    %41 = vector.extract_strided_slice %15 {offsets = [0, 0, 8], sizes = [2, 8, 8], strides = [1, 1, 1]} : vector<2x8x32xf32> to vector<2x8x8xf32>
    %42 = arith.truncf %41 : vector<2x8x8xf32> to vector<2x8x8xbf16>
    %43 = vector.extract_strided_slice %17 {offsets = [0, 0, 8], sizes = [2, 8, 8], strides = [1, 1, 1]} : vector<2x8x32xf32> to vector<2x8x8xf32>
    %44 = arith.truncf %43 : vector<2x8x8xf32> to vector<2x8x8xbf16>
    "tpu.trace_start"() <{level = 10 : i32, message = "bqd,bkd->bqk"}> : () -> ()
    %cst_13 = arith.constant dense<0.000000e+00> : vector<2x8x8xf32>
    %45 = tpu.matmul %40, %42, %cst_13 {dimension_numbers = #tpu.dot_dimension_numbers<[2], [2], [1], [1], [0, 0, 0, 1, 1, 1], [0], [0]>} : vector<2x8x8xbf16>, vector<2x8x8xbf16>, vector<2x8x8xf32> -> vector<2x8x8xf32>
    "tpu.trace_stop"() : () -> ()
    %cst_14 = arith.constant 0.353553385 : f32
    %46 = vector.broadcast %cst_14 : f32 to vector<2x8x8xf32>
    %47 = arith.mulf %45, %46 : vector<2x8x8xf32>
    %cst_15 = arith.constant dense<0xFF800000> : vector<2x8xf32>
    %48 = vector.multi_reduction <maximumf>, %47, %cst_15 [2] : vector<2x8x8xf32> to vector<2x8xf32>
    %49 = vector.shape_cast %48 : vector<2x8xf32> to vector<2x8x1xf32>
    %50 = vector.broadcast %49 : vector<2x8x1xf32> to vector<2x8x8xf32>
    %51 = arith.subf %47, %50 : vector<2x8x8xf32>
    %52 = math.exp %51 : vector<2x8x8xf32>
    %cst_16 = arith.constant dense<0.000000e+00> : vector<2x8xf32>
    %53 = vector.multi_reduction <add>, %52, %cst_16 [2] : vector<2x8x8xf32> to vector<2x8xf32>
    %54 = vector.shape_cast %53 : vector<2x8xf32> to vector<2x8x1xf32>
    %55 = tpu.reciprocal %54 {approx = true} : vector<2x8x1xf32> -> vector<2x8x1xf32>
    %56 = vector.broadcast %55 : vector<2x8x1xf32> to vector<2x8x8xf32>
    %57 = arith.mulf %52, %56 : vector<2x8x8xf32>
    %58 = arith.truncf %57 : vector<2x8x8xf32> to vector<2x8x8xbf16>
    "tpu.trace_start"() <{level = 10 : i32, message = "bqk,bkd->bqd"}> : () -> ()
    %cst_17 = arith.constant dense<0.000000e+00> : vector<2x8x8xf32>
    %59 = tpu.matmul %58, %44, %cst_17 {dimension_numbers = #tpu.dot_dimension_numbers<[2], [1], [1], [2], [0, 0, 0, 1, 1, 2], [0], [0]>} : vector<2x8x8xbf16>, vector<2x8x8xbf16>, vector<2x8x8xf32> -> vector<2x8x8xf32>
    "tpu.trace_stop"() : () -> ()
    %60 = vector.extract_strided_slice %13 {offsets = [0, 0, 16], sizes = [2, 8, 8], strides = [1, 1, 1]} : vector<2x8x32xf32> to vector<2x8x8xf32>
    %61 = arith.truncf %60 : vector<2x8x8xf32> to vector<2x8x8xbf16>
    %62 = vector.extract_strided_slice %15 {offsets = [0, 0, 16], sizes = [2, 8, 8], strides = [1, 1, 1]} : vector<2x8x32xf32> to vector<2x8x8xf32>
    %63 = arith.truncf %62 : vector<2x8x8xf32> to vector<2x8x8xbf16>
    %64 = vector.extract_strided_slice %17 {offsets = [0, 0, 16], sizes = [2, 8, 8], strides = [1, 1, 1]} : vector<2x8x32xf32> to vector<2x8x8xf32>
    %65 = arith.truncf %64 : vector<2x8x8xf32> to vector<2x8x8xbf16>
    "tpu.trace_start"() <{level = 10 : i32, message = "bqd,bkd->bqk"}> : () -> ()
    %cst_18 = arith.constant dense<0.000000e+00> : vector<2x8x8xf32>
    %66 = tpu.matmul %61, %63, %cst_18 {dimension_numbers = #tpu.dot_dimension_numbers<[2], [2], [1], [1], [0, 0, 0, 1, 1, 1], [0], [0]>} : vector<2x8x8xbf16>, vector<2x8x8xbf16>, vector<2x8x8xf32> -> vector<2x8x8xf32>
    "tpu.trace_stop"() : () -> ()
    %cst_19 = arith.constant 0.353553385 : f32
    %67 = vector.broadcast %cst_19 : f32 to vector<2x8x8xf32>
    %68 = arith.mulf %66, %67 : vector<2x8x8xf32>
    %cst_20 = arith.constant dense<0xFF800000> : vector<2x8xf32>
    %69 = vector.multi_reduction <maximumf>, %68, %cst_20 [2] : vector<2x8x8xf32> to vector<2x8xf32>
    %70 = vector.shape_cast %69 : vector<2x8xf32> to vector<2x8x1xf32>
    %71 = vector.broadcast %70 : vector<2x8x1xf32> to vector<2x8x8xf32>
    %72 = arith.subf %68, %71 : vector<2x8x8xf32>
    %73 = math.exp %72 : vector<2x8x8xf32>
    %cst_21 = arith.constant dense<0.000000e+00> : vector<2x8xf32>
    %74 = vector.multi_reduction <add>, %73, %cst_21 [2] : vector<2x8x8xf32> to vector<2x8xf32>
    %75 = vector.shape_cast %74 : vector<2x8xf32> to vector<2x8x1xf32>
    %76 = tpu.reciprocal %75 {approx = true} : vector<2x8x1xf32> -> vector<2x8x1xf32>
    %77 = vector.broadcast %76 : vector<2x8x1xf32> to vector<2x8x8xf32>
    %78 = arith.mulf %73, %77 : vector<2x8x8xf32>
    %79 = arith.truncf %78 : vector<2x8x8xf32> to vector<2x8x8xbf16>
    "tpu.trace_start"() <{level = 10 : i32, message = "bqk,bkd->bqd"}> : () -> ()
    %cst_22 = arith.constant dense<0.000000e+00> : vector<2x8x8xf32>
    %80 = tpu.matmul %79, %65, %cst_22 {dimension_numbers = #tpu.dot_dimension_numbers<[2], [1], [1], [2], [0, 0, 0, 1, 1, 2], [0], [0]>} : vector<2x8x8xbf16>, vector<2x8x8xbf16>, vector<2x8x8xf32> -> vector<2x8x8xf32>
    "tpu.trace_stop"() : () -> ()
    %81 = vector.extract_strided_slice %13 {offsets = [0, 0, 24], sizes = [2, 8, 8], strides = [1, 1, 1]} : vector<2x8x32xf32> to vector<2x8x8xf32>
    %82 = arith.truncf %81 : vector<2x8x8xf32> to vector<2x8x8xbf16>
    %83 = vector.extract_strided_slice %15 {offsets = [0, 0, 24], sizes = [2, 8, 8], strides = [1, 1, 1]} : vector<2x8x32xf32> to vector<2x8x8xf32>
    %84 = arith.truncf %83 : vector<2x8x8xf32> to vector<2x8x8xbf16>
    %85 = vector.extract_strided_slice %17 {offsets = [0, 0, 24], sizes = [2, 8, 8], strides = [1, 1, 1]} : vector<2x8x32xf32> to vector<2x8x8xf32>
    %86 = arith.truncf %85 : vector<2x8x8xf32> to vector<2x8x8xbf16>
    "tpu.trace_start"() <{level = 10 : i32, message = "bqd,bkd->bqk"}> : () -> ()
    %cst_23 = arith.constant dense<0.000000e+00> : vector<2x8x8xf32>
    %87 = tpu.matmul %82, %84, %cst_23 {dimension_numbers = #tpu.dot_dimension_numbers<[2], [2], [1], [1], [0, 0, 0, 1, 1, 1], [0], [0]>} : vector<2x8x8xbf16>, vector<2x8x8xbf16>, vector<2x8x8xf32> -> vector<2x8x8xf32>
    "tpu.trace_stop"() : () -> ()
    %cst_24 = arith.constant 0.353553385 : f32
    %88 = vector.broadcast %cst_24 : f32 to vector<2x8x8xf32>
    %89 = arith.mulf %87, %88 : vector<2x8x8xf32>
    %cst_25 = arith.constant dense<0xFF800000> : vector<2x8xf32>
    %90 = vector.multi_reduction <maximumf>, %89, %cst_25 [2] : vector<2x8x8xf32> to vector<2x8xf32>
    %91 = vector.shape_cast %90 : vector<2x8xf32> to vector<2x8x1xf32>
    %92 = vector.broadcast %91 : vector<2x8x1xf32> to vector<2x8x8xf32>
    %93 = arith.subf %89, %92 : vector<2x8x8xf32>
    %94 = math.exp %93 : vector<2x8x8xf32>
    %cst_26 = arith.constant dense<0.000000e+00> : vector<2x8xf32>
    %95 = vector.multi_reduction <add>, %94, %cst_26 [2] : vector<2x8x8xf32> to vector<2x8xf32>
    %96 = vector.shape_cast %95 : vector<2x8xf32> to vector<2x8x1xf32>
    %97 = tpu.reciprocal %96 {approx = true} : vector<2x8x1xf32> -> vector<2x8x1xf32>
    %98 = vector.broadcast %97 : vector<2x8x1xf32> to vector<2x8x8xf32>
    %99 = arith.mulf %94, %98 : vector<2x8x8xf32>
    %100 = arith.truncf %99 : vector<2x8x8xf32> to vector<2x8x8xbf16>
    "tpu.trace_start"() <{level = 10 : i32, message = "bqk,bkd->bqd"}> : () -> ()
    %cst_27 = arith.constant dense<0.000000e+00> : vector<2x8x8xf32>
    %101 = tpu.matmul %100, %86, %cst_27 {dimension_numbers = #tpu.dot_dimension_numbers<[2], [1], [1], [2], [0, 0, 0, 1, 1, 2], [0], [0]>} : vector<2x8x8xbf16>, vector<2x8x8xbf16>, vector<2x8x8xf32> -> vector<2x8x8xf32>
    "tpu.trace_stop"() : () -> ()
    %102 = tpu.concatenate %38, %59, %80, %101 in 2 : vector<2x8x8xf32>, vector<2x8x8xf32>, vector<2x8x8xf32>, vector<2x8x8xf32> -> vector<2x8x32xf32>
    %103 = vector.shape_cast %102 : vector<2x8x32xf32> to vector<16x32xf32>
    %104 = arith.truncf %103 : vector<16x32xf32> to vector<16x32xbf16>
    %c0_28 = arith.constant 0 : index
    %c0_29 = arith.constant 0 : index
    %c0_30 = arith.constant 0 : index
    %105 = vector.load %arg4[%c0_28, %c0_29, %c0_30] : memref<1x32x32xbf16, #tpu.memory_space<vmem>>, vector<1x32x32xbf16>
    %106 = vector.shape_cast %105 : vector<1x32x32xbf16> to vector<32x32xbf16>
    %cst_31 = arith.constant dense<0.000000e+00> : vector<16x32xf32>
    %107 = tpu.matmul %104, %106, %cst_31 {dimension_numbers = #tpu.dot_dimension_numbers<[1], [0], [0], [1], [0, 0, 1, 1], [], []>} : vector<16x32xbf16>, vector<32x32xbf16>, vector<16x32xf32> -> vector<16x32xf32>
    %c0_32 = arith.constant 0 : index
    %c0_33 = arith.constant 0 : index
    %c0_34 = arith.constant 0 : index
    %108 = vector.load %arg5[%c0_32, %c0_33, %c0_34] : memref<1x1x32xf32, #tpu.memory_space<vmem>>, vector<1x1x32xf32>
    %109 = vector.shape_cast %108 : vector<1x1x32xf32> to vector<1x32xf32>
    %110 = vector.broadcast %109 : vector<1x32xf32> to vector<16x32xf32>
    %111 = arith.addf %107, %110 : vector<16x32xf32>
    %112 = arith.addf %111, %3 : vector<16x32xf32>
    %c0_35 = arith.constant 0 : index
    %c0_36 = arith.constant 0 : index
    %c0_37 = arith.constant 0 : index
    %113 = vector.load %arg6[%c0_35, %c0_36, %c0_37] : memref<1x1x32xf32, #tpu.memory_space<vmem>>, vector<1x1x32xf32>
    %114 = vector.shape_cast %113 : vector<1x1x32xf32> to vector<1x32xf32>
    %c0_38 = arith.constant 0 : index
    %c0_39 = arith.constant 0 : index
    %c0_40 = arith.constant 0 : index
    %115 = vector.load %arg7[%c0_38, %c0_39, %c0_40] : memref<1x1x32xf32, #tpu.memory_space<vmem>>, vector<1x1x32xf32>
    %116 = vector.shape_cast %115 : vector<1x1x32xf32> to vector<1x32xf32>
    %cst_41 = arith.constant dense<0.000000e+00> : vector<16xf32>
    %117 = vector.multi_reduction <add>, %112, %cst_41 [1] : vector<16x32xf32> to vector<16xf32>
    %118 = vector.shape_cast %117 : vector<16xf32> to vector<16x1xf32>
    %cst_42 = arith.constant 3.200000e+01 : f32
    %119 = vector.broadcast %cst_42 : f32 to vector<16x1xf32>
    %120 = arith.divf %118, %119 : vector<16x1xf32>
    %121 = vector.broadcast %120 : vector<16x1xf32> to vector<16x32xf32>
    %122 = arith.subf %112, %121 : vector<16x32xf32>
    %123 = arith.mulf %122, %122 : vector<16x32xf32>
    %cst_43 = arith.constant dense<0.000000e+00> : vector<16xf32>
    %124 = vector.multi_reduction <add>, %123, %cst_43 [1] : vector<16x32xf32> to vector<16xf32>
    %125 = vector.shape_cast %124 : vector<16xf32> to vector<16x1xf32>
    %cst_44 = arith.constant 3.200000e+01 : f32
    %126 = vector.broadcast %cst_44 : f32 to vector<16x1xf32>
    %127 = arith.divf %125, %126 : vector<16x1xf32>
    %128 = vector.broadcast %120 : vector<16x1xf32> to vector<16x32xf32>
    %129 = arith.subf %112, %128 : vector<16x32xf32>
    %cst_45 = arith.constant 9.99999974E-6 : f32
    %130 = vector.broadcast %cst_45 : f32 to vector<16x1xf32>
    %131 = arith.addf %127, %130 : vector<16x1xf32>
    %132 = math.rsqrt %131 : vector<16x1xf32>
    %133 = vector.broadcast %132 : vector<16x1xf32> to vector<16x32xf32>
    %134 = arith.mulf %129, %133 : vector<16x32xf32>
    %135 = vector.broadcast %114 : vector<1x32xf32> to vector<16x32xf32>
    %136 = arith.mulf %134, %135 : vector<16x32xf32>
    %137 = vector.broadcast %116 : vector<1x32xf32> to vector<16x32xf32>
    %138 = arith.addf %136, %137 : vector<16x32xf32>
    %139 = arith.truncf %138 : vector<16x32xf32> to vector<16x32xbf16>
    %c0_46 = arith.constant 0 : index
    %c0_47 = arith.constant 0 : index
    %c0_48 = arith.constant 0 : index
    %140 = vector.load %arg8[%c0_46, %c0_47, %c0_48] : memref<1x32x64xbf16, #tpu.memory_space<vmem>>, vector<1x32x64xbf16>
    %141 = vector.shape_cast %140 : vector<1x32x64xbf16> to vector<32x64xbf16>
    %cst_49 = arith.constant dense<0.000000e+00> : vector<16x64xf32>
    %142 = tpu.matmul %139, %141, %cst_49 {dimension_numbers = #tpu.dot_dimension_numbers<[1], [0], [0], [1], [0, 0, 1, 1], [], []>} : vector<16x32xbf16>, vector<32x64xbf16>, vector<16x64xf32> -> vector<16x64xf32>
    %c0_50 = arith.constant 0 : index
    %c0_51 = arith.constant 0 : index
    %c0_52 = arith.constant 0 : index
    %143 = vector.load %arg9[%c0_50, %c0_51, %c0_52] : memref<1x1x64xf32, #tpu.memory_space<vmem>>, vector<1x1x64xf32>
    %144 = vector.shape_cast %143 : vector<1x1x64xf32> to vector<1x64xf32>
    %145 = vector.broadcast %144 : vector<1x64xf32> to vector<16x64xf32>
    %146 = arith.addf %142, %145 : vector<16x64xf32>
    %cst_53 = arith.constant 0.000000e+00 : f32
    %147 = vector.broadcast %cst_53 : f32 to vector<16x64xf32>
    %148 = arith.maximumf %146, %147 : vector<16x64xf32>
    %149 = arith.truncf %148 : vector<16x64xf32> to vector<16x64xbf16>
    %c0_54 = arith.constant 0 : index
    %c0_55 = arith.constant 0 : index
    %c0_56 = arith.constant 0 : index
    %150 = vector.load %arg10[%c0_54, %c0_55, %c0_56] : memref<1x64x32xbf16, #tpu.memory_space<vmem>>, vector<1x64x32xbf16>
    %151 = vector.shape_cast %150 : vector<1x64x32xbf16> to vector<64x32xbf16>
    %cst_57 = arith.constant dense<0.000000e+00> : vector<16x32xf32>
    %152 = tpu.matmul %149, %151, %cst_57 {dimension_numbers = #tpu.dot_dimension_numbers<[1], [0], [0], [1], [0, 0, 1, 1], [], []>} : vector<16x64xbf16>, vector<64x32xbf16>, vector<16x32xf32> -> vector<16x32xf32>
    %c0_58 = arith.constant 0 : index
    %c0_59 = arith.constant 0 : index
    %c0_60 = arith.constant 0 : index
    %153 = vector.load %arg11[%c0_58, %c0_59, %c0_60] : memref<1x1x32xf32, #tpu.memory_space<vmem>>, vector<1x1x32xf32>
    %154 = vector.shape_cast %153 : vector<1x1x32xf32> to vector<1x32xf32>
    %155 = vector.broadcast %154 : vector<1x32xf32> to vector<16x32xf32>
    %156 = arith.addf %152, %155 : vector<16x32xf32>
    %157 = arith.addf %156, %138 : vector<16x32xf32>
    %c0_61 = arith.constant 0 : index
    %c0_62 = arith.constant 0 : index
    %c0_63 = arith.constant 0 : index
    %158 = vector.load %arg12[%c0_61, %c0_62, %c0_63] : memref<1x1x32xf32, #tpu.memory_space<vmem>>, vector<1x1x32xf32>
    %159 = vector.shape_cast %158 : vector<1x1x32xf32> to vector<1x32xf32>
    %c0_64 = arith.constant 0 : index
    %c0_65 = arith.constant 0 : index
    %c0_66 = arith.constant 0 : index
    %160 = vector.load %arg13[%c0_64, %c0_65, %c0_66] : memref<1x1x32xf32, #tpu.memory_space<vmem>>, vector<1x1x32xf32>
    %161 = vector.shape_cast %160 : vector<1x1x32xf32> to vector<1x32xf32>
    %cst_67 = arith.constant dense<0.000000e+00> : vector<16xf32>
    %162 = vector.multi_reduction <add>, %157, %cst_67 [1] : vector<16x32xf32> to vector<16xf32>
    %163 = vector.shape_cast %162 : vector<16xf32> to vector<16x1xf32>
    %cst_68 = arith.constant 3.200000e+01 : f32
    %164 = vector.broadcast %cst_68 : f32 to vector<16x1xf32>
    %165 = arith.divf %163, %164 : vector<16x1xf32>
    %166 = vector.broadcast %165 : vector<16x1xf32> to vector<16x32xf32>
    %167 = arith.subf %157, %166 : vector<16x32xf32>
    %168 = arith.mulf %167, %167 : vector<16x32xf32>
    %cst_69 = arith.constant dense<0.000000e+00> : vector<16xf32>
    %169 = vector.multi_reduction <add>, %168, %cst_69 [1] : vector<16x32xf32> to vector<16xf32>
    %170 = vector.shape_cast %169 : vector<16xf32> to vector<16x1xf32>
    %cst_70 = arith.constant 3.200000e+01 : f32
    %171 = vector.broadcast %cst_70 : f32 to vector<16x1xf32>
    %172 = arith.divf %170, %171 : vector<16x1xf32>
    %173 = vector.broadcast %165 : vector<16x1xf32> to vector<16x32xf32>
    %174 = arith.subf %157, %173 : vector<16x32xf32>
    %cst_71 = arith.constant 9.99999974E-6 : f32
    %175 = vector.broadcast %cst_71 : f32 to vector<16x1xf32>
    %176 = arith.addf %172, %175 : vector<16x1xf32>
    %177 = math.rsqrt %176 : vector<16x1xf32>
    %178 = vector.broadcast %177 : vector<16x1xf32> to vector<16x32xf32>
    %179 = arith.mulf %174, %178 : vector<16x32xf32>
    %180 = vector.broadcast %159 : vector<1x32xf32> to vector<16x32xf32>
    %181 = arith.mulf %179, %180 : vector<16x32xf32>
    %182 = vector.broadcast %161 : vector<1x32xf32> to vector<16x32xf32>
    %183 = arith.addf %181, %182 : vector<16x32xf32>
    %c0_72 = arith.constant 0 : index
    %c0_73 = arith.constant 0 : index
    %184 = vector.load %arg14[%c0_72, %c0_73] : memref<16x32xf32, #tpu.memory_space<vmem>>, vector<16x32xf32>
    tpu.vector_store %arg14[%c0_72, %c0_73], %183 {strides = array<i32>} : memref<16x32xf32, #tpu.memory_space<vmem>>, vector<16x32xf32>,
    return
  }
  func.func @transform_0(%arg0: i32) -> (i32, i32) {
    %c0_i32 = arith.constant 0 : i32
    %c0_i32_0 = arith.constant 0 : i32
    %c0_i32_1 = arith.constant 0 : i32
    return %c0_i32, %c0_i32_0 : i32, i32
  }
  func.func @transform_1(%arg0: i32) -> (i32, i32, i32) {
    %c0_i32 = arith.constant 0 : i32
    %c0_i32_0 = arith.constant 0 : i32
    %c0_i32_1 = arith.constant 0 : i32
    return %arg0, %c0_i32, %c0_i32_0 : i32, i32, i32
  }
  func.func @transform_2(%arg0: i32) -> (i32, i32, i32) {
    %c0_i32 = arith.constant 0 : i32
    %c0_i32_0 = arith.constant 0 : i32
    %c0_i32_1 = arith.constant 0 : i32
    return %arg0, %c0_i32, %c0_i32_0 : i32, i32, i32
  }
  func.func @transform_3(%arg0: i32) -> (i32, i32, i32) {
    %c0_i32 = arith.constant 0 : i32
    %c0_i32_0 = arith.constant 0 : i32
    %c0_i32_1 = arith.constant 0 : i32
    return %arg0, %c0_i32, %c0_i32_0 : i32, i32, i32
  }
  func.func @transform_4(%arg0: i32) -> (i32, i32, i32) {
    %c0_i32 = arith.constant 0 : i32
    %c0_i32_0 = arith.constant 0 : i32
    %c0_i32_1 = arith.constant 0 : i32
    return %arg0, %c0_i32, %c0_i32_0 : i32, i32, i32
  }
  func.func @transform_5(%arg0: i32) -> (i32, i32, i32) {
    %c0_i32 = arith.constant 0 : i32
    %c0_i32_0 = arith.constant 0 : i32
    %c0_i32_1 = arith.constant 0 : i32
    return %arg0, %c0_i32, %c0_i32_0 : i32, i32, i32
  }
  func.func @transform_6(%arg0: i32) -> (i32, i32, i32) {
    %c0_i32 = arith.constant 0 : i32
    %c0_i32_0 = arith.constant 0 : i32
    %c0_i32_1 = arith.constant 0 : i32
    return %arg0, %c0_i32, %c0_i32_0 : i32, i32, i32
  }
  func.func @transform_7(%arg0: i32) -> (i32, i32, i32) {
    %c0_i32 = arith.constant 0 : i32
    %c0_i32_0 = arith.constant 0 : i32
    %c0_i32_1 = arith.constant 0 : i32
    return %arg0, %c0_i32, %c0_i32_0 : i32, i32, i32
  }
  func.func @transform_8(%arg0: i32) -> (i32, i32, i32) {
    %c0_i32 = arith.constant 0 : i32
    %c0_i32_0 = arith.constant 0 : i32
    %c0_i32_1 = arith.constant 0 : i32
    return %arg0, %c0_i32, %c0_i32_0 : i32, i32, i32
  }
  func.func @transform_9(%arg0: i32) -> (i32, i32, i32) {
    %c0_i32 = arith.constant 0 : i32
    %c0_i32_0 = arith.constant 0 : i32
    %c0_i32_1 = arith.constant 0 : i32
    return %arg0, %c0_i32, %c0_i32_0 : i32, i32, i32
  }
  func.func @transform_10(%arg0: i32) -> (i32, i32, i32) {
    %c0_i32 = arith.constant 0 : i32
    %c0_i32_0 = arith.constant 0 : i32
    %c0_i32_1 = arith.constant 0 : i32
    return %arg0, %c0_i32, %c0_i32_0 : i32, i32, i32
  }
  func.func @transform_11(%arg0: i32) -> (i32, i32, i32) {
    %c0_i32 = arith.constant 0 : i32
    %c0_i32_0 = arith.constant 0 : i32
    %c0_i32_1 = arith.constant 0 : i32
    return %arg0, %c0_i32, %c0_i32_0 : i32, i32, i32
  }
  func.func @transform_12(%arg0: i32) -> (i32, i32, i32) {
    %c0_i32 = arith.constant 0 : i32
    %c0_i32_0 = arith.constant 0 : i32
    %c0_i32_1 = arith.constant 0 : i32
    return %arg0, %c0_i32, %c0_i32_0 : i32, i32, i32
  }
  func.func @transform_13(%arg0: i32) -> (i32, i32) {
    %c0_i32 = arith.constant 0 : i32
    %c0_i32_0 = arith.constant 0 : i32
    %c0_i32_1 = arith.constant 0 : i32
    return %c0_i32, %c0_i32_0 : i32, i32
  }
}

</mosaic_0001>

<llo_original>
// kernel: tpu_custom_call.1
$region0: #{tpu_custom_call.1}
  #allocation0 [shape = 'u32[]', space=smem, size = 0x4, offset = 0x4, fixed_abs, tag = 'smem constant byte address 0x4 - core index']
  #allocation1 [shape = 'u32[144,128]{1,0:T(1,128)}', space=vmem, size = 0x12000, scoped, tag = 'internal scratch']
  %s0 = inlined_call_operand.hbm [shape: f32[16,32], index: 0, kind: input, shape index: {}]
  %s1 = inlined_call_operand.vmem [shape: bf16[2,32,96], index: 1, kind: input, shape index: {}]
  %s2 = inlined_call_operand.vmem [shape: f32[2,1,96], index: 2, kind: input, shape index: {}]
  %s3 = inlined_call_operand.vmem [shape: bf16[2,32,32], index: 3, kind: input, shape index: {}]
  %s4 = inlined_call_operand.hbm [shape: f32[2,1,32], index: 4, kind: input, shape index: {}]
  %s5 = inlined_call_operand.hbm [shape: f32[2,1,32], index: 5, kind: input, shape index: {}]
  %s6 = inlined_call_operand.hbm [shape: f32[2,1,32], index: 6, kind: input, shape index: {}]
  %s7 = inlined_call_operand.vmem [shape: bf16[2,32,64], index: 7, kind: input, shape index: {}]
  %s8 = inlined_call_operand.hbm [shape: f32[2,1,64], index: 8, kind: input, shape index: {}]
  %s9 = inlined_call_operand.vmem [shape: bf16[2,64,32], index: 9, kind: input, shape index: {}]
  %s10 = inlined_call_operand.vmem [shape: f32[2,1,32], index: 10, kind: input, shape index: {}]
  %s11 = inlined_call_operand.vmem [shape: f32[2,1,32], index: 11, kind: input, shape index: {}]
  %s12 = inlined_call_operand.vmem [shape: f32[2,1,32], index: 12, kind: input, shape index: {}]
  %s13 = inlined_call_operand.hbm [shape: f32[16,32], index: 13, kind: output, shape index: {}]
  %s14 = sld [smem:[#allocation0]]
  $region109: #{tpu_custom_call.1} parent=0
    _
  %s16 = ssub.s32 1, %s14
  %s17 = scalar_select 0, %s16, %s14
  $region1: #{tpu_custom_call.1} parent=0
    #allocation2 [shape = 'u8[8192]{0}', space=vmem, size = 0x2000, scoped, tag = 'input window, operand 0, single buffered']
    #allocation3 [shape = 's32[2]{0}', space=sflag, size = 0x8, scoped, tag = 'scoped memory for tpu_custom_call.1']
    #allocation4 [shape = 's32[2]{0}', space=sflag, size = 0x8, scoped, tag = 'scoped memory for tpu_custom_call.1']
    #allocation5 [shape = 'u8[1024]{0}', space=vmem, size = 0x400, scoped, tag = 'input window, operand 4']
    #allocation6 [shape = 's32[2]{0}', space=sflag, size = 0x8, scoped, tag = 'scoped memory for tpu_custom_call.1']
    #allocation7 [shape = 'u8[1024]{0}', space=vmem, size = 0x400, scoped, tag = 'input window, operand 5']
    #allocation8 [shape = 'u8[1024]{0}', space=vmem, size = 0x400, scoped, tag = 'input window, operand 6']
    #allocation9 [shape = 's32[2]{0}', space=sflag, size = 0x8, scoped, tag = 'scoped memory for tpu_custom_call.1']
    #allocation10 [shape = 'u8[1024]{0}', space=vmem, size = 0x400, scoped, tag = 'input window, operand 8']
    #allocation11 [shape = 'u8[8192]{0}', space=vmem, size = 0x2000, scoped, tag = 'output window, operand 0, single buffered']
    %18 = vsyncpa [#allocation3], 0
    %19 = vsyncpa [#allocation6], 0
    %s20 = scalar_lea.sflag [#allocation6], 1
    %21 = vsyncpa %s20, 0
    %22 = vsyncpa [#allocation9], 0
    %s23 = scalar_lea.sflag [#allocation9], 1
    %24 = vsyncpa %s23, 0
    %25 = vsyncpa [#allocation4], 0
    loop: start=0, step=1, limit=4
    $region2: #{tpu_custom_call.1} parent=1 // loop_pre_header
      _
    $region3: #{tpu_custom_call.1} parent=1 // loop_header
      %s27 = sphi 0, %s31
      %p28 = scmp.ge.s32.totalorder %s27, 4
      %s35 = sphi 0, %s35
      %s37 = sphi 0, %s35
      %s38 = sphi 0, %s37
      %s52 = sphi 0, %s38
      %s58 = sphi 0, %s60
      %s61 = sphi 0, %s58
      %s62 = sphi 0, %s61
      %s78 = sphi 0, %s62
      %s84 = sphi 0, %s86
      %s87 = sphi 0, %s84
      %s88 = sphi 0, %s87
      %s104 = sphi 0, %s88
      %s110 = sphi 0, %s112
      %s113 = sphi 0, %s110
      %s114 = sphi 0, %s113
      %s130 = sphi 0, %s114
      %s136 = sphi 0, %s138
      %s139 = sphi 0, %s136
      %s140 = sphi 0, %s139
      %s156 = sphi 0, %s140
      %s162 = sphi 0, %s164
      %s165 = sphi 0, %s162
      %s166 = sphi 0, %s165
      %s182 = sphi 0, %s166
      %s188 = sphi 0, %s190
      %s191 = sphi 0, %s188
      %s192 = sphi 0, %s191
      %s208 = sphi 0, %s192
      %s214 = sphi 0, %s216
      %s217 = sphi 0, %s214
      %s218 = sphi 0, %s217
      %s234 = sphi 0, %s218
      %s240 = sphi 0, %s242
      %s243 = sphi 0, %s240
      %s244 = sphi 0, %s243
      %s260 = sphi 0, %s244
      %s266 = sphi 0, %s268
      %s269 = sphi 0, %s266
      %s270 = sphi 0, %s269
      %s286 = sphi 0, %s270
      %s292 = sphi 0, %s294
      %s295 = sphi 0, %s292
      %s296 = sphi 0, %s295
      %s312 = sphi 0, %s296
      %s318 = sphi 0, %s320
      %s321 = sphi 0, %s318
      %s322 = sphi 0, %s321
      %s338 = sphi 0, %s322
      %s344 = sphi 0, %s346
      %s347 = sphi 0, %s344
      %s348 = sphi 0, %s347
      %s364 = sphi 0, %s348
      %s368 = sphi 0, %s368
      %s370 = sphi 0, %s368
      %s371 = sphi 0, %s370
      %s385 = sphi 0, %s371
    $region4: #{tpu_custom_call.1} parent=1 // loop_header_branch
      %30 = sbr.rel (%p28) target = $region8
    $region5: #{tpu_custom_call.1} parent=1 // loop_body
      %s32 = ssub.s32 %s27, 1
      %s33 = ssub.s32 %s27, 2
      %s34 = sadd.s32 %s27, 1
      %s36 = sadd.s32 %s35, 1
      %p39 = scmp.eq.s32.totalorder %s27, 1
      %p40 = scmp.ne.s32.totalorder %s35, %s37
      %p41 = scmp.eq.s32.totalorder %s27, 0
      %p42 = por %p40, %p41
      %p43 = scmp.ne.s32.totalorder %s35, %s37
      %p44 = scmp.eq.s32.totalorder %s32, 1
      %p45 = por %p43, %p44
      %p46 = scmp.ne.s32.totalorder %s37, %s38
      %p47 = scmp.eq.s32.totalorder %s32, 0
      %p48 = por %p46, %p47
      %p49 = scmp.ne.s32.totalorder %s37, %s38
      %p50 = scmp.eq.s32.totalorder %s33, 1
      %p51 = por %p49, %p50
      %p53 = scmp.ne.s32.totalorder %s38, %s52
      %p54 = scmp.eq.s32.totalorder %s33, 0
      %p55 = por %p53, %p54
      %s56 = ssub.s32 %s27, %s34
      %p57 = scmp.eq.s32.totalorder %s56, 0
      %s59 = sadd.s32 %s58, 1
      %s60 = scalar_select %p57, %s58, %s59
      %p63 = pneg %p57
      %p64 = scmp.eq.s32.totalorder %s27, 1
      %p65 = por %p63, %p64
      %p66 = scmp.ne.s32.totalorder %s58, %s61
      %p67 = scmp.eq.s32.totalorder %s27, 0
      %p68 = por %p66, %p67
      %p69 = scmp.ne.s32.totalorder %s58, %s61
      %p70 = scmp.eq.s32.totalorder %s32, 1
      %p71 = por %p69, %p70
      %p72 = scmp.ne.s32.totalorder %s61, %s62
      %p73 = scmp.eq.s32.totalorder %s32, 0
      %p74 = por %p72, %p73
      %p75 = scmp.ne.s32.totalorder %s61, %s62
      %p76 = scmp.eq.s32.totalorder %s33, 1
      %p77 = por %p75, %p76
      %p79 = scmp.ne.s32.totalorder %s62, %s78
      %p80 = scmp.eq.s32.totalorder %s33, 0
      %p81 = por %p79, %p80
      %s82 = ssub.s32 %s27, %s34
      %p83 = scmp.eq.s32.totalorder %s82, 0
      %s85 = sadd.s32 %s84, 1
      %s86 = scalar_select %p83, %s84, %s85
      %p89 = pneg %p83
      %p90 = scmp.eq.s32.totalorder %s27, 1
      %p91 = por %p89, %p90
      %p92 = scmp.ne.s32.totalorder %s84, %s87
      %p93 = scmp.eq.s32.totalorder %s27, 0
      %p94 = por %p92, %p93
      %p95 = scmp.ne.s32.totalorder %s84, %s87
      %p96 = scmp.eq.s32.totalorder %s32, 1
      %p97 = por %p95, %p96
      %p98 = scmp.ne.s32.totalorder %s87, %s88
      %p99 = scmp.eq.s32.totalorder %s32, 0
      %p100 = por %p98, %p99
      %p101 = scmp.ne.s32.totalorder %s87, %s88
      %p102 = scmp.eq.s32.totalorder %s33, 1
      %p103 = por %p101, %p102
      %p105 = scmp.ne.s32.totalorder %s88, %s104
      %p106 = scmp.eq.s32.totalorder %s33, 0
      %p107 = por %p105, %p106
      %s108 = ssub.s32 %s27, %s34
      %p109 = scmp.eq.s32.totalorder %s108, 0
      %s111 = sadd.s32 %s110, 1
      %s112 = scalar_select %p109, %s110, %s111
      %p115 = pneg %p109
      %p116 = scmp.eq.s32.totalorder %s27, 1
      %p117 = por %p115, %p116
      %p118 = scmp.ne.s32.totalorder %s110, %s113
      %p119 = scmp.eq.s32.totalorder %s27, 0
      %p120 = por %p118, %p119
      %p121 = scmp.ne.s32.totalorder %s110, %s113
      %p122 = scmp.eq.s32.totalorder %s32, 1
      %p123 = por %p121, %p122
      %p124 = scmp.ne.s32.totalorder %s113, %s114
      %p125 = scmp.eq.s32.totalorder %s32, 0
      %p126 = por %p124, %p125
      %p127 = scmp.ne.s32.totalorder %s113, %s114
      %p128 = scmp.eq.s32.totalorder %s33, 1
      %p129 = por %p127, %p128
      %p131 = scmp.ne.s32.totalorder %s114, %s130
      %p132 = scmp.eq.s32.totalorder %s33, 0
      %p133 = por %p131, %p132
      %s134 = ssub.s32 %s27, %s34
      %p135 = scmp.eq.s32.totalorder %s134, 0
      %s137 = sadd.s32 %s136, 1
      %s138 = scalar_select %p135, %s136, %s137
      %p141 = pneg %p135
      %p142 = scmp.eq.s32.totalorder %s27, 1
      %p143 = por %p141, %p142
      %p144 = scmp.ne.s32.totalorder %s136, %s139
      %p145 = scmp.eq.s32.totalorder %s27, 0
      %p146 = por %p144, %p145
      %p147 = scmp.ne.s32.totalorder %s136, %s139
      %p148 = scmp.eq.s32.totalorder %s32, 1
      %p149 = por %p147, %p148
      %p150 = scmp.ne.s32.totalorder %s139, %s140
      %p151 = scmp.eq.s32.totalorder %s32, 0
      %p152 = por %p150, %p151
      %p153 = scmp.ne.s32.totalorder %s139, %s140
      %p154 = scmp.eq.s32.totalorder %s33, 1
      %p155 = por %p153, %p154
      %p157 = scmp.ne.s32.totalorder %s140, %s156
      %p158 = scmp.eq.s32.totalorder %s33, 0
      %p159 = por %p157, %p158
      %s160 = ssub.s32 %s27, %s34
      %p161 = scmp.eq.s32.totalorder %s160, 0
      %s163 = sadd.s32 %s162, 1
      %s164 = scalar_select %p161, %s162, %s163
      %p167 = pneg %p161
      %p168 = scmp.eq.s32.totalorder %s27, 1
      %p169 = por %p167, %p168
      %p170 = scmp.ne.s32.totalorder %s162, %s165
      %p171 = scmp.eq.s32.totalorder %s27, 0
      %p172 = por %p170, %p171
      %p173 = scmp.ne.s32.totalorder %s162, %s165
      %p174 = scmp.eq.s32.totalorder %s32, 1
      %p175 = por %p173, %p174
      %p176 = scmp.ne.s32.totalorder %s165, %s166
      %p177 = scmp.eq.s32.totalorder %s32, 0
      %p178 = por %p176, %p177
      %p179 = scmp.ne.s32.totalorder %s165, %s166
      %p180 = scmp.eq.s32.totalorder %s33, 1
      %p181 = por %p179, %p180
      %p183 = scmp.ne.s32.totalorder %s166, %s182
      %p184 = scmp.eq.s32.totalorder %s33, 0
      %p185 = por %p183, %p184
      %s186 = ssub.s32 %s27, %s34
      %p187 = scmp.eq.s32.totalorder %s186, 0
      %s189 = sadd.s32 %s188, 1
      %s190 = scalar_select %p187, %s188, %s189
      %p193 = pneg %p187
      %p194 = scmp.eq.s32.totalorder %s27, 1
      %p195 = por %p193, %p194
      %p196 = scmp.ne.s32.totalorder %s188, %s191
      %p197 = scmp.eq.s32.totalorder %s27, 0
      %p198 = por %p196, %p197
      %p199 = scmp.ne.s32.totalorder %s188, %s191
      %p200 = scmp.eq.s32.totalorder %s32, 1
      %p201 = por %p199, %p200
      %p202 = scmp.ne.s32.totalorder %s191, %s192
      %p203 = scmp.eq.s32.totalorder %s32, 0
      %p204 = por %p202, %p203
      %p205 = scmp.ne.s32.totalorder %s191, %s192
      %p206 = scmp.eq.s32.totalorder %s33, 1
      %p207 = por %p205, %p206
      %p209 = scmp.ne.s32.totalorder %s192, %s208
      %p210 = scmp.eq.s32.totalorder %s33, 0
      %p211 = por %p209, %p210
      %s212 = ssub.s32 %s27, %s34
      %p213 = scmp.eq.s32.totalorder %s212, 0
      %s215 = sadd.s32 %s214, 1
      %s216 = scalar_select %p213, %s214, %s215
      %p219 = pneg %p213
      %p220 = scmp.eq.s32.totalorder %s27, 1
      %p221 = por %p219, %p220
      %p222 = scmp.ne.s32.totalorder %s214, %s217
      %p223 = scmp.eq.s32.totalorder %s27, 0
      %p224 = por %p222, %p223
      %p225 = scmp.ne.s32.totalorder %s214, %s217
      %p226 = scmp.eq.s32.totalorder %s32, 1
      %p227 = por %p225, %p226
      %p228 = scmp.ne.s32.totalorder %s217, %s218
      %p229 = scmp.eq.s32.totalorder %s32, 0
      %p230 = por %p228, %p229
      %p231 = scmp.ne.s32.totalorder %s217, %s218
      %p232 = scmp.eq.s32.totalorder %s33, 1
      %p233 = por %p231, %p232
      %p235 = scmp.ne.s32.totalorder %s218, %s234
      %p236 = scmp.eq.s32.totalorder %s33, 0
      %p237 = por %p235, %p236
      %s238 = ssub.s32 %s27, %s34
      %p239 = scmp.eq.s32.totalorder %s238, 0
      %s241 = sadd.s32 %s240, 1
      %s242 = scalar_select %p239, %s240, %s241
      %p245 = pneg %p239
      %p246 = scmp.eq.s32.totalorder %s27, 1
      %p247 = por %p245, %p246
      %p248 = scmp.ne.s32.totalorder %s240, %s243
      %p249 = scmp.eq.s32.totalorder %s27, 0
      %p250 = por %p248, %p249
      %p251 = scmp.ne.s32.totalorder %s240, %s243
      %p252 = scmp.eq.s32.totalorder %s32, 1
      %p253 = por %p251, %p252
      %p254 = scmp.ne.s32.totalorder %s243, %s244
      %p255 = scmp.eq.s32.totalorder %s32, 0
      %p256 = por %p254, %p255
      %p257 = scmp.ne.s32.totalorder %s243, %s244
      %p258 = scmp.eq.s32.totalorder %s33, 1
      %p259 = por %p257, %p258
      %p261 = scmp.ne.s32.totalorder %s244, %s260
      %p262 = scmp.eq.s32.totalorder %s33, 0
      %p263 = por %p261, %p262
      %s264 = ssub.s32 %s27, %s34
      %p265 = scmp.eq.s32.totalorder %s264, 0
      %s267 = sadd.s32 %s266, 1
      %s268 = scalar_select %p265, %s266, %s267
      %p271 = pneg %p265
      %p272 = scmp.eq.s32.totalorder %s27, 1
      %p273 = por %p271, %p272
      %p274 = scmp.ne.s32.totalorder %s266, %s269
      %p275 = scmp.eq.s32.totalorder %s27, 0
      %p276 = por %p274, %p275
      %p277 = scmp.ne.s32.totalorder %s266, %s269
      %p278 = scmp.eq.s32.totalorder %s32, 1
      %p279 = por %p277, %p278
      %p280 = scmp.ne.s32.totalorder %s269, %s270
      %p281 = scmp.eq.s32.totalorder %s32, 0
      %p282 = por %p280, %p281
      %p283 = scmp.ne.s32.totalorder %s269, %s270
      %p284 = scmp.eq.s32.totalorder %s33, 1
      %p285 = por %p283, %p284
      %p287 = scmp.ne.s32.totalorder %s270, %s286
      %p288 = scmp.eq.s32.totalorder %s33, 0
      %p289 = por %p287, %p288
      %s290 = ssub.s32 %s27, %s34
      %p291 = scmp.eq.s32.totalorder %s290, 0
      %s293 = sadd.s32 %s292, 1
      %s294 = scalar_select %p291, %s292, %s293
      %p297 = pneg %p291
      %p298 = scmp.eq.s32.totalorder %s27, 1
      %p299 = por %p297, %p298
      %p300 = scmp.ne.s32.totalorder %s292, %s295
      %p301 = scmp.eq.s32.totalorder %s27, 0
      %p302 = por %p300, %p301
      %p303 = scmp.ne.s32.totalorder %s292, %s295
      %p304 = scmp.eq.s32.totalorder %s32, 1
      %p305 = por %p303, %p304
      %p306 = scmp.ne.s32.totalorder %s295, %s296
      %p307 = scmp.eq.s32.totalorder %s32, 0
      %p308 = por %p306, %p307
      %p309 = scmp.ne.s32.totalorder %s295, %s296
      %p310 = scmp.eq.s32.totalorder %s33, 1
      %p311 = por %p309, %p310
      %p313 = scmp.ne.s32.totalorder %s296, %s312
      %p314 = scmp.eq.s32.totalorder %s33, 0
      %p315 = por %p313, %p314
      %s316 = ssub.s32 %s27, %s34
      %p317 = scmp.eq.s32.totalorder %s316, 0
      %s319 = sadd.s32 %s318, 1
      %s320 = scalar_select %p317, %s318, %s319
      %p323 = pneg %p317
      %p324 = scmp.eq.s32.totalorder %s27, 1
      %p325 = por %p323, %p324
      %p326 = scmp.ne.s32.totalorder %s318, %s321
      %p327 = scmp.eq.s32.totalorder %s27, 0
      %p328 = por %p326, %p327
      %p329 = scmp.ne.s32.totalorder %s318, %s321
      %p330 = scmp.eq.s32.totalorder %s32, 1
      %p331 = por %p329, %p330
      %p332 = scmp.ne.s32.totalorder %s321, %s322
      %p333 = scmp.eq.s32.totalorder %s32, 0
      %p334 = por %p332, %p333
      %p335 = scmp.ne.s32.totalorder %s321, %s322
      %p336 = scmp.eq.s32.totalorder %s33, 1
      %p337 = por %p335, %p336
      %p339 = scmp.ne.s32.totalorder %s322, %s338
      %p340 = scmp.eq.s32.totalorder %s33, 0
      %p341 = por %p339, %p340
      %s342 = ssub.s32 %s27, %s34
      %p343 = scmp.eq.s32.totalorder %s342, 0
      %s345 = sadd.s32 %s344, 1
      %s346 = scalar_select %p343, %s344, %s345
      %p349 = pneg %p343
      %p350 = scmp.eq.s32.totalorder %s27, 1
      %p351 = por %p349, %p350
      %p352 = scmp.ne.s32.totalorder %s344, %s347
      %p353 = scmp.eq.s32.totalorder %s27, 0
      %p354 = por %p352, %p353
      %p355 = scmp.ne.s32.totalorder %s344, %s347
      %p356 = scmp.eq.s32.totalorder %s32, 1
      %p357 = por %p355, %p356
      %p358 = scmp.ne.s32.totalorder %s347, %s348
      %p359 = scmp.eq.s32.totalorder %s32, 0
      %p360 = por %p358, %p359
      %p361 = scmp.ne.s32.totalorder %s347, %s348
      %p362 = scmp.eq.s32.totalorder %s33, 1
      %p363 = por %p361, %p362
      %p365 = scmp.ne.s32.totalorder %s348, %s364
      %p366 = scmp.eq.s32.totalorder %s33, 0
      %p367 = por %p365, %p366
      %s369 = sadd.s32 %s368, 1
      %p372 = scmp.eq.s32.totalorder %s27, 1
      %p373 = scmp.ne.s32.totalorder %s368, %s370
      %p374 = scmp.eq.s32.totalorder %s27, 0
      %p375 = por %p373, %p374
      %p376 = scmp.ne.s32.totalorder %s368, %s370
      %p377 = scmp.eq.s32.totalorder %s32, 1
      %p378 = por %p376, %p377
      %p379 = scmp.ne.s32.totalorder %s370, %s371
      %p380 = scmp.eq.s32.totalorder %s32, 0
      %p381 = por %p379, %p380
      %p382 = scmp.ne.s32.totalorder %s370, %s371
      %p383 = scmp.eq.s32.totalorder %s33, 1
      %p384 = por %p382, %p383
      %p386 = scmp.ne.s32.totalorder %s371, %s385
      %p387 = scmp.eq.s32.totalorder %s33, 0
      %p388 = por %p386, %p387
      %p389 = scmp.le.s32.totalorder 1, %s27
      %p390 = scmp.lt.s32.totalorder %s27, 3
      %p391 = pnand %p389, %p390
      %p392 = pneg %p391
      // Predicated region
      $region9: #{tpu_custom_call.1} parent=5 // pred_check
        _
      $region10: #{tpu_custom_call.1} parent=5 // pred_check_branch
        %394 = sbr.rel (%p391) target = $region12
      $region11: #{tpu_custom_call.1} parent=5 // pred_region
        %s395 = ssub.s32 %s27, 1
        // Predicated region
        $region13: #{tpu_custom_call.1} parent=11 // pred_check
          %p396 = pneg %p48
        $region14: #{tpu_custom_call.1} parent=11 // pred_check_branch
          %398 = sbr.rel (%p396) target = $region16
        $region15: #{tpu_custom_call.1} parent=11 // pred_region
          %s400 = ssub.s32 256, 256
          %401 = vsyncadd [#allocation3], %s400
          %s402 = sshll.u32 [#allocation2], 4
          %s403 = int_to_ptr.vmem [resolvable:$true] %s402
          %408 = dma.hbm_to_vmem [thread:$0]  %s0, 256, %s403, [#allocation3], 128, 128, 8
        $region16: #{tpu_custom_call.1} parent=11 // pred_fallthru
          _
      $region12: #{tpu_custom_call.1} parent=5 // pred_fallthru
        _
      %p409 = scmp.lt.s32.totalorder %s27, 2
      // Predicated region
      $region17: #{tpu_custom_call.1} parent=5 // pred_check
        %p410 = pneg %p409
      $region18: #{tpu_custom_call.1} parent=5 // pred_check_branch
        %412 = sbr.rel (%p410) target = $region20
      $region19: #{tpu_custom_call.1} parent=5 // pred_region
        // Predicated region
        $region21: #{tpu_custom_call.1} parent=19 // pred_check
          %p413 = pneg %p68
        $region22: #{tpu_custom_call.1} parent=19 // pred_check_branch
          %415 = sbr.rel (%p413) target = $region24
        $region23: #{tpu_custom_call.1} parent=19 // pred_region
          %p416 = scmp.lt.s32.totalorder %s27, 1
          %s417 = scalar_select %p416, %s27, 1
          %s418 = smul.addr %s417, 4
          %s419 = smul.addr %s418, 4
          %s420 = scalar_lea.vmem %s1, %s419
        $region24: #{tpu_custom_call.1} parent=19 // pred_fallthru
          _
        // Predicated region
        $region25: #{tpu_custom_call.1} parent=19 // pred_check
          %p421 = pneg %p94
        $region26: #{tpu_custom_call.1} parent=19 // pred_check_branch
          %423 = sbr.rel (%p421) target = $region28
        $region27: #{tpu_custom_call.1} parent=19 // pred_region
          %p424 = scmp.lt.s32.totalorder %s27, 1
          %s425 = scalar_select %p424, %s27, 1
          %s426 = scalar_lea.vmem %s2, %s425
        $region28: #{tpu_custom_call.1} parent=19 // pred_fallthru
          _
        // Predicated region
        $region29: #{tpu_custom_call.1} parent=19 // pred_check
          %p427 = pneg %p120
        $region30: #{tpu_custom_call.1} parent=19 // pred_check_branch
          %429 = sbr.rel (%p427) target = $region32
        $region31: #{tpu_custom_call.1} parent=19 // pred_region
          %p430 = scmp.lt.s32.totalorder %s27, 1
          %s431 = scalar_select %p430, %s27, 1
          %s432 = smul.addr %s431, 4
          %s433 = smul.addr %s432, 4
          %s434 = scalar_lea.vmem %s3, %s433
        $region32: #{tpu_custom_call.1} parent=19 // pred_fallthru
          _
        // Predicated region
        $region33: #{tpu_custom_call.1} parent=19 // pred_check
          %p435 = pneg %p146
        $region34: #{tpu_custom_call.1} parent=19 // pred_check_branch
          %437 = sbr.rel (%p435) target = $region36
        $region35: #{tpu_custom_call.1} parent=19 // pred_region
          %s438 = sand.u32 %s27, 1
          %s439 = scalar_lea.sflag [#allocation6], %s438
          %s440 = sand.u32 %s136, 1
          %s441 = scalar_lea.vmem [#allocation5], %s440
          %s443 = ssub.s32 16, 16
          %444 = vsyncadd %s439, %s443
          %s445 = smul.addr %s27, 16
          %s446 = scalar_lea.hbm %s4, %s445
          %s448 = sshll.u32 %s441, 4
          %s449 = int_to_ptr.vmem [resolvable:$true] %s448
          %451 = dma.hbm_to_vmem [thread:$0]  %s446, 16, %s449, %s439
        $region36: #{tpu_custom_call.1} parent=19 // pred_fallthru
          _
        // Predicated region
        $region37: #{tpu_custom_call.1} parent=19 // pred_check
          %p452 = pneg %p172
        $region38: #{tpu_custom_call.1} parent=19 // pred_check_branch
          %454 = sbr.rel (%p452) target = $region40
        $region39: #{tpu_custom_call.1} parent=19 // pred_region
          %s455 = sand.u32 %s27, 1
          %s456 = scalar_lea.sflag [#allocation6], %s455
          %s457 = sand.u32 %s162, 1
          %s458 = scalar_lea.vmem [#allocation7], %s457
          %s460 = ssub.s32 16, 16
          %461 = vsyncadd %s456, %s460
          %s462 = smul.addr %s27, 16
          %s463 = scalar_lea.hbm %s5, %s462
          %s465 = sshll.u32 %s458, 4
          %s466 = int_to_ptr.vmem [resolvable:$true] %s465
          %468 = dma.hbm_to_vmem [thread:$0]  %s463, 16, %s466, %s456
        $region40: #{tpu_custom_call.1} parent=19 // pred_fallthru
          _
        // Predicated region
        $region41: #{tpu_custom_call.1} parent=19 // pred_check
          %p469 = pneg %p198
        $region42: #{tpu_custom_call.1} parent=19 // pred_check_branch
          %471 = sbr.rel (%p469) target = $region44
        $region43: #{tpu_custom_call.1} parent=19 // pred_region
          %s472 = sand.u32 %s27, 1
          %s473 = scalar_lea.sflag [#allocation9], %s472
          %s474 = sand.u32 %s188, 1
          %s475 = scalar_lea.vmem [#allocation8], %s474
          %s477 = ssub.s32 16, 16
          %478 = vsyncadd %s473, %s477
          %s479 = smul.addr %s27, 16
          %s480 = scalar_lea.hbm %s6, %s479
          %s482 = sshll.u32 %s475, 4
          %s483 = int_to_ptr.vmem [resolvable:$true] %s482
          %485 = dma.hbm_to_vmem [thread:$0]  %s480, 16, %s483, %s473
        $region44: #{tpu_custom_call.1} parent=19 // pred_fallthru
          _
        // Predicated region
        $region45: #{tpu_custom_call.1} parent=19 // pred_check
          %p486 = pneg %p224
        $region46: #{tpu_custom_call.1} parent=19 // pred_check_branch
          %488 = sbr.rel (%p486) target = $region48
        $region47: #{tpu_custom_call.1} parent=19 // pred_region
          %p489 = scmp.lt.s32.totalorder %s27, 1
          %s490 = scalar_select %p489, %s27, 1
          %s491 = smul.addr %s490, 4
          %s492 = smul.addr %s491, 4
          %s493 = scalar_lea.vmem %s7, %s492
        $region48: #{tpu_custom_call.1} parent=19 // pred_fallthru
          _
        // Predicated region
        $region49: #{tpu_custom_call.1} parent=19 // pred_check
          %p494 = pneg %p250
        $region50: #{tpu_custom_call.1} parent=19 // pred_check_branch
          %496 = sbr.rel (%p494) target = $region52
        $region51: #{tpu_custom_call.1} parent=19 // pred_region
          %s497 = sand.u32 %s27, 1
          %s498 = scalar_lea.sflag [#allocation9], %s497
          %s499 = sand.u32 %s240, 1
          %s500 = scalar_lea.vmem [#allocation10], %s499
          %s502 = ssub.s32 16, 16
          %503 = vsyncadd %s498, %s502
          %s504 = smul.addr %s27, 16
          %s505 = scalar_lea.hbm %s8, %s504
          %s507 = sshll.u32 %s500, 4
          %s508 = int_to_ptr.vmem [resolvable:$true] %s507
          %510 = dma.hbm_to_vmem [thread:$0]  %s505, 16, %s508, %s498
        $region52: #{tpu_custom_call.1} parent=19 // pred_fallthru
          _
        // Predicated region
        $region53: #{tpu_custom_call.1} parent=19 // pred_check
          %p511 = pneg %p276
        $region54: #{tpu_custom_call.1} parent=19 // pred_check_branch
          %513 = sbr.rel (%p511) target = $region56
        $region55: #{tpu_custom_call.1} parent=19 // pred_region
          %p514 = scmp.lt.s32.totalorder %s27, 1
          %s515 = scalar_select %p514, %s27, 1
          %s516 = smul.addr %s515, 8
          %s517 = smul.addr %s516, 4
          %s518 = scalar_lea.vmem %s9, %s517
        $region56: #{tpu_custom_call.1} parent=19 // pred_fallthru
          _
        // Predicated region
        $region57: #{tpu_custom_call.1} parent=19 // pred_check
          %p519 = pneg %p302
        $region58: #{tpu_custom_call.1} parent=19 // pred_check_branch
          %521 = sbr.rel (%p519) target = $region60
        $region59: #{tpu_custom_call.1} parent=19 // pred_region
          %p522 = scmp.lt.s32.totalorder %s27, 1
          %s523 = scalar_select %p522, %s27, 1
          %s524 = scalar_lea.vmem %s10, %s523
        $region60: #{tpu_custom_call.1} parent=19 // pred_fallthru
          _
        // Predicated region
        $region61: #{tpu_custom_call.1} parent=19 // pred_check
          %p525 = pneg %p328
        $region62: #{tpu_custom_call.1} parent=19 // pred_check_branch
          %527 = sbr.rel (%p525) target = $region64
        $region63: #{tpu_custom_call.1} parent=19 // pred_region
          %p528 = scmp.lt.s32.totalorder %s27, 1
          %s529 = scalar_select %p528, %s27, 1
          %s530 = scalar_lea.vmem %s11, %s529
        $region64: #{tpu_custom_call.1} parent=19 // pred_fallthru
          _
        // Predicated region
        $region65: #{tpu_custom_call.1} parent=19 // pred_check
          %p531 = pneg %p354
        $region66: #{tpu_custom_call.1} parent=19 // pred_check_branch
          %533 = sbr.rel (%p531) target = $region68
        $region67: #{tpu_custom_call.1} parent=19 // pred_region
          %p534 = scmp.lt.s32.totalorder %s27, 1
          %s535 = scalar_select %p534, %s27, 1
          %s536 = scalar_lea.vmem %s12, %s535
        $region68: #{tpu_custom_call.1} parent=19 // pred_fallthru
          _
      $region20: #{tpu_custom_call.1} parent=5 // pred_fallthru
        _
      %p537 = scmp.le.s32.totalorder 1, %s27
      %p538 = scmp.lt.s32.totalorder %s27, 3
      %p539 = pnand %p537, %p538
      %p540 = pneg %p539
      // Predicated region
      $region69: #{tpu_custom_call.1} parent=5 // pred_check
        _
      $region70: #{tpu_custom_call.1} parent=5 // pred_check_branch
        %542 = sbr.rel (%p539) target = $region72
      $region71: #{tpu_custom_call.1} parent=5 // pred_region
        %s543 = ssub.s32 %s27, 1
        // Predicated region
        $region73: #{tpu_custom_call.1} parent=71 // pred_check
          %p544 = pneg %p48
        $region74: #{tpu_custom_call.1} parent=71 // pred_check_branch
          %546 = sbr.rel (%p544) target = $region76
        $region75: #{tpu_custom_call.1} parent=71 // pred_region
          %547 = dma.done [#allocation3], 256
        $region76: #{tpu_custom_call.1} parent=71 // pred_fallthru
          _
        %s548 = sand.u32 %s32, 1
        %s549 = scalar_lea.sflag [#allocation6], %s548
        %s550 = sand.u32 %s139, 1
        %s551 = scalar_lea.vmem [#allocation5], %s550
        // Predicated region
        $region77: #{tpu_custom_call.1} parent=71 // pred_check
          %p552 = pneg %p152
        $region78: #{tpu_custom_call.1} parent=71 // pred_check_branch
          %554 = sbr.rel (%p552) target = $region80
        $region79: #{tpu_custom_call.1} parent=71 // pred_region
          %555 = dma.done %s549, 16
        $region80: #{tpu_custom_call.1} parent=71 // pred_fallthru
          _
        %s556 = sand.u32 %s32, 1
        %s557 = scalar_lea.sflag [#allocation6], %s556
        %s558 = sand.u32 %s165, 1
        %s559 = scalar_lea.vmem [#allocation7], %s558
        // Predicated region
        $region81: #{tpu_custom_call.1} parent=71 // pred_check
          %p560 = pneg %p178
        $region82: #{tpu_custom_call.1} parent=71 // pred_check_branch
          %562 = sbr.rel (%p560) target = $region84
        $region83: #{tpu_custom_call.1} parent=71 // pred_region
          %563 = dma.done %s557, 16
        $region84: #{tpu_custom_call.1} parent=71 // pred_fallthru
          _
        %s564 = sand.u32 %s32, 1
        %s565 = scalar_lea.sflag [#allocation9], %s564
        %s566 = sand.u32 %s191, 1
        %s567 = scalar_lea.vmem [#allocation8], %s566
        // Predicated region
        $region85: #{tpu_custom_call.1} parent=71 // pred_check
          %p568 = pneg %p204
        $region86: #{tpu_custom_call.1} parent=71 // pred_check_branch
          %570 = sbr.rel (%p568) target = $region88
        $region87: #{tpu_custom_call.1} parent=71 // pred_region
          %571 = dma.done %s565, 16
        $region88: #{tpu_custom_call.1} parent=71 // pred_fallthru
          _
        %s572 = sand.u32 %s32, 1
        %s573 = scalar_lea.sflag [#allocation9], %s572
        %s574 = sand.u32 %s243, 1
        %s575 = scalar_lea.vmem [#allocation10], %s574
        // Predicated region
        $region89: #{tpu_custom_call.1} parent=71 // pred_check
          %p576 = pneg %p256
        $region90: #{tpu_custom_call.1} parent=71 // pred_check_branch
          %578 = sbr.rel (%p576) target = $region92
        $region91: #{tpu_custom_call.1} parent=71 // pred_region
          %579 = dma.done %s573, 16
        $region92: #{tpu_custom_call.1} parent=71 // pred_fallthru
          _
        %p580 = pneg %p48
        %p581 = pneg %p45
        %p582 = scmp.lt.s32.totalorder %s32, 1
        %s583 = scalar_select %p582, %s32, 1
        %s584 = smul.addr %s583, 4
        %s585 = smul.addr %s584, 4
        %s586 = scalar_lea.vmem %s1, %s585
        %p587 = pneg %p74
        %p588 = pneg %p71
        %p589 = scmp.lt.s32.totalorder %s32, 1
        %s590 = scalar_select %p589, %s32, 1
        %s591 = scalar_lea.vmem %s2, %s590
        %p592 = pneg %p100
        %p593 = pneg %p97
        %p594 = scmp.lt.s32.totalorder %s32, 1
        %s595 = scalar_select %p594, %s32, 1
        %s596 = smul.addr %s595, 4
        %s597 = smul.addr %s596, 4
        %s598 = scalar_lea.vmem %s3, %s597
        %p599 = pneg %p126
        %p600 = pneg %p123
        %s601 = sand.u32 %s32, 1
        %s602 = scalar_lea.sflag [#allocation6], %s601
        %s603 = sand.u32 %s139, 1
        %s604 = scalar_lea.vmem [#allocation5], %s603
        %p605 = pneg %p152
        %p606 = pneg %p149
        %s607 = sand.u32 %s32, 1
        %s608 = scalar_lea.sflag [#allocation6], %s607
        %s609 = sand.u32 %s165, 1
        %s610 = scalar_lea.vmem [#allocation7], %s609
        %p611 = pneg %p178
        %p612 = pneg %p175
        %s613 = sand.u32 %s32, 1
        %s614 = scalar_lea.sflag [#allocation9], %s613
        %s615 = sand.u32 %s191, 1
        %s616 = scalar_lea.vmem [#allocation8], %s615
        %p617 = pneg %p204
        %p618 = pneg %p201
        %p619 = scmp.lt.s32.totalorder %s32, 1
        %s620 = scalar_select %p619, %s32, 1
        %s621 = smul.addr %s620, 4
        %s622 = smul.addr %s621, 4
        %s623 = scalar_lea.vmem %s7, %s622
        %p624 = pneg %p230
        %p625 = pneg %p227
        %s626 = sand.u32 %s32, 1
        %s627 = scalar_lea.sflag [#allocation9], %s626
        %s628 = sand.u32 %s243, 1
        %s629 = scalar_lea.vmem [#allocation10], %s628
        %p630 = pneg %p256
        %p631 = pneg %p253
        %p632 = scmp.lt.s32.totalorder %s32, 1
        %s633 = scalar_select %p632, %s32, 1
        %s634 = smul.addr %s633, 8
        %s635 = smul.addr %s634, 4
        %s636 = scalar_lea.vmem %s9, %s635
        %p637 = pneg %p282
        %p638 = pneg %p279
        %p639 = scmp.lt.s32.totalorder %s32, 1
        %s640 = scalar_select %p639, %s32, 1
        %s641 = scalar_lea.vmem %s10, %s640
        %p642 = pneg %p308
        %p643 = pneg %p305
        %p644 = scmp.lt.s32.totalorder %s32, 1
        %s645 = scalar_select %p644, %s32, 1
        %s646 = scalar_lea.vmem %s11, %s645
        %p647 = pneg %p334
        %p648 = pneg %p331
        %p649 = scmp.lt.s32.totalorder %s32, 1
        %s650 = scalar_select %p649, %s32, 1
        %s651 = scalar_lea.vmem %s12, %s650
        %p652 = pneg %p360
        %p653 = pneg %p357
        %p654 = pneg %p381
        %p655 = pneg %p378
        %p656 = scmp.lt.s32.totalorder %s32, 1
        %s657 = scalar_select %p656, %s32, 1
        %s658 = smul.addr %s657, 4
        %s659 = smul.addr %s658, 4
        %s660 = scalar_lea.vmem %s1, %s659
        %p661 = scmp.lt.s32.totalorder %s32, 1
        %s662 = scalar_select %p661, %s32, 1
        %s663 = scalar_lea.vmem %s2, %s662
        %p664 = scmp.lt.s32.totalorder %s32, 1
        %s665 = scalar_select %p664, %s32, 1
        %s666 = smul.addr %s665, 4
        %s667 = smul.addr %s666, 4
        %s668 = scalar_lea.vmem %s3, %s667
        %p669 = scmp.lt.s32.totalorder %s32, 1
        %s670 = scalar_select %p669, %s32, 1
        %s671 = smul.addr %s670, 4
        %s672 = smul.addr %s671, 4
        %s673 = scalar_lea.vmem %s7, %s672
        %p674 = scmp.lt.s32.totalorder %s32, 1
        %s675 = scalar_select %p674, %s32, 1
        %s676 = smul.addr %s675, 8
        %s677 = smul.addr %s676, 4
        %s678 = scalar_lea.vmem %s9, %s677
        %p679 = scmp.lt.s32.totalorder %s32, 1
        %s680 = scalar_select %p679, %s32, 1
        %s681 = scalar_lea.vmem %s10, %s680
        %p682 = scmp.lt.s32.totalorder %s32, 1
        %s683 = scalar_select %p682, %s32, 1
        %s684 = scalar_lea.vmem %s11, %s683
        %p685 = scmp.lt.s32.totalorder %s32, 1
        %s686 = scalar_select %p685, %s32, 1
        %s687 = scalar_lea.vmem %s12, %s686
        %p689 = scmp.eq.s32.totalorder %s32, 0
        // Predicated region
        $region93: #{tpu_custom_call.1} parent=71 // pred_check
          %p690 = pneg %p689
        $region94: #{tpu_custom_call.1} parent=71 // pred_check_branch
          %692 = sbr.rel (%p690) target = $region96
        $region95: #{tpu_custom_call.1} parent=71 // pred_region
          %v693 = vld [vmem:[#allocation2] sm:$0xff]
          %v694 = vld [vmem:[#allocation2 + $0x8] sm:$0xff]
          %vm695 = vcmask 261120
          %696 = vst.msk [vmem:[#allocation11] sm:$0xff] %vm695, %v693
          %697 = vst.msk [vmem:[#allocation11 + $0x8] sm:$0xff] %vm695, %v694
        $region96: #{tpu_custom_call.1} parent=71 // pred_fallthru
          _
        %v698 = vld [vmem:[#allocation11] sm:$0xff]
        %v699 = vld [vmem:[#allocation11 + $0x8] sm:$0xff]
        %v700 = vpack.c.bf16 %v699, %v698
        %v701 = vld [vmem:[%s660] sm:$0xf]
        %v702 = vld [vmem:[%s660 + $0x4] sm:$0xf]
        %v703 = vld [vmem:[%s660 + $0x8] sm:$0xf]
        %v704 = vld [vmem:[%s660 + $0xc] sm:$0xf]
        %v705 = vld [vmem:[%s663] sm:$0x1]
        %v707 = vlaneseq
        %v708 = vshrl.u32 %v707, 7
        %v709 = vsub.s32 0, %v708
        %v710 = vrot.slane %v705, %v709
        %v716 = vunpack.c.l.b16 %v701
        %v717 = vunpack.c.l.b16 %v702
        %v718 = vunpack.c.l.b16 %v703
        %v719 = vunpack.c.l.b16 %v704
        %v720 = vpack.c.b16 %v717, %v716
        %v721 = vpack.c.b16 %v719, %v718
        %vm724 = vcmask 261120
        %v726 = vsel %vm724, %v700, 0
        %728 = vmatprep.subr.bf16.mxu0 0
        %729 = vmatpush1.bf16.msra.mxu0 %v720
        %730 = vmatprep.subr.bf16.mxu0 0
        %731 = vmatpush1.bf16.msra.mxu0 %v721
        %732 = vmatprep.subr.bf16.mxu0 0
        %733 = vmatpush1.bf16.msra.mxu0 0
        %734 = vmatprep.subr.bf16.mxu0 0
        %735 = vmatpush1.bf16.msra.mxu0 0
        %736 = vmatprep.subr.bf16.mxu0 0
        %737 = vmatpush1.bf16.msra.mxu0 0
        %738 = vmatprep.subr.bf16.mxu0 0
        %739 = vmatpush1.bf16.msra.mxu0 0
        %740 = vmatprep.subr.bf16.mxu0 0
        %741 = vmatpush1.bf16.msra.mxu0 0
        %742 = vmatprep.subr.bf16.mxu0 0
        %743 = vmatpush1.bf16.msra.mxu0 0
        %744 = vmatprep.subr.bf16.mxu0 0
        %745 = vmatpush1.bf16.msra.mxu0 0
        %746 = vmatprep.subr.bf16.mxu0 0
        %747 = vmatpush1.bf16.msra.mxu0 0
        %748 = vmatprep.subr.bf16.mxu0 0
        %749 = vmatpush1.bf16.msra.mxu0 0
        %750 = vmatprep.subr.bf16.mxu0 0
        %751 = vmatpush1.bf16.msra.mxu0 0
        %752 = vmatprep.subr.bf16.mxu0 0
        %753 = vmatpush1.bf16.msra.mxu0 0
        %754 = vmatprep.subr.bf16.mxu0 0
        %755 = vmatpush1.bf16.msra.mxu0 0
        %756 = vmatprep.subr.bf16.mxu0 0
        %757 = vmatpush1.bf16.msra.mxu0 0
        %758 = vmatprep.subr.bf16.mxu0 0
        %759 = vmatpush1.bf16.msra.mxu0 0
        %760 = vmatprep.mubr.bf16.mxu0 0
        %761 = vmatmul.mubr.bf16.gmra.mrb[0].mxu0 %v726
        %v762 = vpop.f32.mrb[0].mxu0
        %v763 = vadd.f32 %v710, %v762
        %v764 = vpop.f32.mrb[0].mxu0
        %v765 = vpop.f32.mrb[0].mxu0
        %v766 = vadd.f32 %v710, %v765
        %v767 = vpop.f32.mrb[0].mxu0
        %768 = vdwg.mxu0
        %v769 = vpack.c.bf16 %v763, %v763
        %v770 = vpack.c.bf16 %v766, %v766
        %772 = vrot.lane.b32.xlu0 %v769, 96
        %v773 = vpop.permute.xlu0 %772
        %vm774 = vcmask 64512
        %v776 = vsel %vm774, %v769, 0
        %v779 = vsel %vm774, %v773, 0
        %781 = vmatprep.subr.bf16.mxu0 0
        %782 = vmatpush1.bf16.xpose.msra.mxu0 %v779
        %783 = vmatprep.subr.bf16.mxu0 0
        %784 = vmatpush1.bf16.xpose.msra.mxu0 0
        %785 = vmatprep.subr.bf16.mxu0 0
        %786 = vmatpush1.bf16.xpose.msra.mxu0 0
        %787 = vmatprep.subr.bf16.mxu0 0
        %788 = vmatpush1.bf16.xpose.msra.mxu0 0
        %789 = vmatprep.subr.bf16.mxu0 0
        %790 = vmatpush1.bf16.xpose.msra.mxu0 0
        %791 = vmatprep.subr.bf16.mxu0 0
        %792 = vmatpush1.bf16.xpose.msra.mxu0 0
        %793 = vmatprep.subr.bf16.mxu0 0
        %794 = vmatpush1.bf16.xpose.msra.mxu0 0
        %795 = vmatprep.subr.bf16.mxu0 0
        %796 = vmatpush1.bf16.xpose.msra.mxu0 0
        %797 = vmatprep.subr.bf16.mxu0 0
        %798 = vmatpush1.bf16.xpose.msra.mxu0 0
        %799 = vmatprep.subr.bf16.mxu0 0
        %800 = vmatpush1.bf16.xpose.msra.mxu0 0
        %801 = vmatprep.subr.bf16.mxu0 0
        %802 = vmatpush1.bf16.xpose.msra.mxu0 0
        %803 = vmatprep.subr.bf16.mxu0 0
        %804 = vmatpush1.bf16.xpose.msra.mxu0 0
        %805 = vmatprep.subr.bf16.mxu0 0
        %806 = vmatpush1.bf16.xpose.msra.mxu0 0
        %807 = vmatprep.subr.bf16.mxu0 0
        %808 = vmatpush1.bf16.xpose.msra.mxu0 0
        %809 = vmatprep.subr.bf16.mxu0 0
        %810 = vmatpush1.bf16.xpose.msra.mxu0 0
        %811 = vmatprep.subr.bf16.mxu0 0
        %812 = vmatpush1.bf16.xpose.msra.mxu0 0
        %813 = vmatprep.mubr.bf16.mxu0 0
        %814 = vmatmul.mubr.bf16.gmra.mrb[0].mxu0 %v776
        %v815 = vpop.f32.mrb[0].mxu0
        %v816 = vadd.f32 0.0, %v815
        %v817 = vpop.f32.mrb[0].mxu0
        %v818 = vpop.f32.mrb[0].mxu0
        %v819 = vpop.f32.mrb[0].mxu0
        %820 = vdwg.mxu0
        %822 = vrot.lane.b32.xlu0 %v770, 96
        %v823 = vpop.permute.xlu0 %822
        %v825 = vsel %vm774, %v770, 0
        %v828 = vsel %vm774, %v823, 0
        %830 = vmatprep.subr.bf16.mxu0 0
        %831 = vmatpush1.bf16.xpose.msra.mxu0 %v828
        %832 = vmatprep.subr.bf16.mxu0 0
        %833 = vmatpush1.bf16.xpose.msra.mxu0 0
        %834 = vmatprep.subr.bf16.mxu0 0
        %835 = vmatpush1.bf16.xpose.msra.mxu0 0
        %836 = vmatprep.subr.bf16.mxu0 0
        %837 = vmatpush1.bf16.xpose.msra.mxu0 0
        %838 = vmatprep.subr.bf16.mxu0 0
        %839 = vmatpush1.bf16.xpose.msra.mxu0 0
        %840 = vmatprep.subr.bf16.mxu0 0
        %841 = vmatpush1.bf16.xpose.msra.mxu0 0
        %842 = vmatprep.subr.bf16.mxu0 0
        %843 = vmatpush1.bf16.xpose.msra.mxu0 0
        %844 = vmatprep.subr.bf16.mxu0 0
        %845 = vmatpush1.bf16.xpose.msra.mxu0 0
        %846 = vmatprep.subr.bf16.mxu0 0
        %847 = vmatpush1.bf16.xpose.msra.mxu0 0
        %848 = vmatprep.subr.bf16.mxu0 0
        %849 = vmatpush1.bf16.xpose.msra.mxu0 0
        %850 = vmatprep.subr.bf16.mxu0 0
        %851 = vmatpush1.bf16.xpose.msra.mxu0 0
        %852 = vmatprep.subr.bf16.mxu0 0
        %853 = vmatpush1.bf16.xpose.msra.mxu0 0
        %854 = vmatprep.subr.bf16.mxu0 0
        %855 = vmatpush1.bf16.xpose.msra.mxu0 0
        %856 = vmatprep.subr.bf16.mxu0 0
        %857 = vmatpush1.bf16.xpose.msra.mxu0 0
        %858 = vmatprep.subr.bf16.mxu0 0
        %859 = vmatpush1.bf16.xpose.msra.mxu0 0
        %860 = vmatprep.subr.bf16.mxu0 0
        %861 = vmatpush1.bf16.xpose.msra.mxu0 0
        %862 = vmatprep.mubr.bf16.mxu0 0
        %863 = vmatmul.mubr.bf16.gmra.mrb[0].mxu0 %v825
        %v864 = vpop.f32.mrb[0].mxu0
        %v865 = vadd.f32 0.0, %v864
        %v866 = vpop.f32.mrb[0].mxu0
        %v867 = vpop.f32.mrb[0].mxu0
        %v868 = vpop.f32.mrb[0].mxu0
        %869 = vdwg.mxu0
        %v870 = vmul.f32 %v816, 0.35355338
        %v871 = vmul.f32 %v865, 0.35355338
        %v872 = vsel %vm774, %v870, -inf
        %873 = vmax.xlane.f32.xlu0 %v872
        %v874 = vpop.xlane.xlu0 %873
        %v875 = vsel %vm774, %v871, -inf
        %876 = vmax.xlane.f32.xlu0 %v875
        %v877 = vpop.xlane.xlu0 %876
        %v878 = vsub.f32 %v870, %v874
        %v879 = vsub.f32 %v871, %v877
        %v880 = vmul.f32 %v878, 1.442695
        %v881 = vpow.pop %v880
        %v882 = vmul.f32 %v879, 1.442695
        %v883 = vpow.pop %v882
        %v884 = vsel %vm774, %v881, 0.0
        %885 = vadd.xlane.f32.xlu0 %v884
        %v886 = vpop.xlane.xlu0 %885
        %v887 = vsel %vm774, %v883, 0.0
        %888 = vadd.xlane.f32.xlu0 %v887
        %v889 = vpop.xlane.xlu0 %888
        %v890 = vrcp.pop %v886
        %v891 = vrcp.pop %v889
        %v892 = vmul.f32 %v881, %v890
        %v893 = vmul.f32 %v883, %v891
        %v894 = vpack.c.bf16 %v892, %v892
        %v895 = vpack.c.bf16 %v893, %v893
        %896 = vrot.lane.b32.xlu0 %v769, 64
        %v897 = vpop.permute.xlu0 %896
        %v899 = vsel %vm774, %v894, 0
        %vm901 = vcmask 1043456
        %v903 = vsel %vm901, %v897, 0
        %905 = vmatprep.subr.bf16.mxu0 0
        %906 = vmatpush1.bf16.msra.mxu0 %v903
        %907 = vmatprep.subr.bf16.mxu0 0
        %908 = vmatpush1.bf16.msra.mxu0 0
        %909 = vmatprep.subr.bf16.mxu0 0
        %910 = vmatpush1.bf16.msra.mxu0 0
        %911 = vmatprep.subr.bf16.mxu0 0
        %912 = vmatpush1.bf16.msra.mxu0 0
        %913 = vmatprep.subr.bf16.mxu0 0
        %914 = vmatpush1.bf16.msra.mxu0 0
        %915 = vmatprep.subr.bf16.mxu0 0
        %916 = vmatpush1.bf16.msra.mxu0 0
        %917 = vmatprep.subr.bf16.mxu0 0
        %918 = vmatpush1.bf16.msra.mxu0 0
        %919 = vmatprep.subr.bf16.mxu0 0
        %920 = vmatpush1.bf16.msra.mxu0 0
        %921 = vmatprep.subr.bf16.mxu0 0
        %922 = vmatpush1.bf16.msra.mxu0 0
        %923 = vmatprep.subr.bf16.mxu0 0
        %924 = vmatpush1.bf16.msra.mxu0 0
        %925 = vmatprep.subr.bf16.mxu0 0
        %926 = vmatpush1.bf16.msra.mxu0 0
        %927 = vmatprep.subr.bf16.mxu0 0
        %928 = vmatpush1.bf16.msra.mxu0 0
        %929 = vmatprep.subr.bf16.mxu0 0
        %930 = vmatpush1.bf16.msra.mxu0 0
        %931 = vmatprep.subr.bf16.mxu0 0
        %932 = vmatpush1.bf16.msra.mxu0 0
        %933 = vmatprep.subr.bf16.mxu0 0
        %934 = vmatpush1.bf16.msra.mxu0 0
        %935 = vmatprep.subr.bf16.mxu0 0
        %936 = vmatpush1.bf16.msra.mxu0 0
        %937 = vmatprep.mubr.bf16.mxu0 0
        %938 = vmatmul.mubr.bf16.gmra.mrb[0].mxu0 %v899
        %v939 = vpop.f32.mrb[0].mxu0
        %v940 = vadd.f32 0.0, %v939
        %v941 = vpop.f32.mrb[0].mxu0
        %v942 = vpop.f32.mrb[0].mxu0
        %v943 = vpop.f32.mrb[0].mxu0
        %944 = vdwg.mxu0
        %945 = vrot.lane.b32.xlu0 %v770, 64
        %v946 = vpop.permute.xlu0 %945
        %v948 = vsel %vm774, %v895, 0
        %v951 = vsel %vm901, %v946, 0
        %953 = vmatprep.subr.bf16.mxu0 0
        %954 = vmatpush1.bf16.msra.mxu0 %v951
        %955 = vmatprep.subr.bf16.mxu0 0
        %956 = vmatpush1.bf16.msra.mxu0 0
        %957 = vmatprep.subr.bf16.mxu0 0
        %958 = vmatpush1.bf16.msra.mxu0 0
        %959 = vmatprep.subr.bf16.mxu0 0
        %960 = vmatpush1.bf16.msra.mxu0 0
        %961 = vmatprep.subr.bf16.mxu0 0
        %962 = vmatpush1.bf16.msra.mxu0 0
        %963 = vmatprep.subr.bf16.mxu0 0
        %964 = vmatpush1.bf16.msra.mxu0 0
        %965 = vmatprep.subr.bf16.mxu0 0
        %966 = vmatpush1.bf16.msra.mxu0 0
        %967 = vmatprep.subr.bf16.mxu0 0
        %968 = vmatpush1.bf16.msra.mxu0 0
        %969 = vmatprep.subr.bf16.mxu0 0
        %970 = vmatpush1.bf16.msra.mxu0 0
        %971 = vmatprep.subr.bf16.mxu0 0
        %972 = vmatpush1.bf16.msra.mxu0 0
        %973 = vmatprep.subr.bf16.mxu0 0
        %974 = vmatpush1.bf16.msra.mxu0 0
        %975 = vmatprep.subr.bf16.mxu0 0
        %976 = vmatpush1.bf16.msra.mxu0 0
        %977 = vmatprep.subr.bf16.mxu0 0
        %978 = vmatpush1.bf16.msra.mxu0 0
        %979 = vmatprep.subr.bf16.mxu0 0
        %980 = vmatpush1.bf16.msra.mxu0 0
        %981 = vmatprep.subr.bf16.mxu0 0
        %982 = vmatpush1.bf16.msra.mxu0 0
        %983 = vmatprep.subr.bf16.mxu0 0
        %984 = vmatpush1.bf16.msra.mxu0 0
        %985 = vmatprep.mubr.bf16.mxu0 0
        %986 = vmatmul.mubr.bf16.gmra.mrb[0].mxu0 %v948
        %v987 = vpop.f32.mrb[0].mxu0
        %v988 = vadd.f32 0.0, %v987
        %v989 = vpop.f32.mrb[0].mxu0
        %v990 = vpop.f32.mrb[0].mxu0
        %v991 = vpop.f32.mrb[0].mxu0
        %992 = vdwg.mxu0
        %993 = vrot.lane.b32.xlu0 %v769, 120
        %v994 = vpop.permute.xlu0 %993
        %995 = vrot.lane.b32.xlu0 %v769, 88
        %v996 = vpop.permute.xlu0 %995
        %v998 = vsel %vm774, %v994, 0
        %v1001 = vsel %vm774, %v996, 0
        %1003 = vmatprep.subr.bf16.mxu0 0
        %1004 = vmatpush1.bf16.xpose.msra.mxu0 %v1001
        %1005 = vmatprep.subr.bf16.mxu0 0
        %1006 = vmatpush1.bf16.xpose.msra.mxu0 0
        %1007 = vmatprep.subr.bf16.mxu0 0
        %1008 = vmatpush1.bf16.xpose.msra.mxu0 0
        %1009 = vmatprep.subr.bf16.mxu0 0
        %1010 = vmatpush1.bf16.xpose.msra.mxu0 0
        %1011 = vmatprep.subr.bf16.mxu0 0
        %1012 = vmatpush1.bf16.xpose.msra.mxu0 0
        %1013 = vmatprep.subr.bf16.mxu0 0
        %1014 = vmatpush1.bf16.xpose.msra.mxu0 0
        %1015 = vmatprep.subr.bf16.mxu0 0
        %1016 = vmatpush1.bf16.xpose.msra.mxu0 0
        %1017 = vmatprep.subr.bf16.mxu0 0
        %1018 = vmatpush1.bf16.xpose.msra.mxu0 0
        %1019 = vmatprep.subr.bf16.mxu0 0
        %1020 = vmatpush1.bf16.xpose.msra.mxu0 0
        %1021 = vmatprep.subr.bf16.mxu0 0
        %1022 = vmatpush1.bf16.xpose.msra.mxu0 0
        %1023 = vmatprep.subr.bf16.mxu0 0
        %1024 = vmatpush1.bf16.xpose.msra.mxu0 0
        %1025 = vmatprep.subr.bf16.mxu0 0
        %1026 = vmatpush1.bf16.xpose.msra.mxu0 0
        %1027 = vmatprep.subr.bf16.mxu0 0
        %1028 = vmatpush1.bf16.xpose.msra.mxu0 0
        %1029 = vmatprep.subr.bf16.mxu0 0
        %1030 = vmatpush1.bf16.xpose.msra.mxu0 0
        %1031 = vmatprep.subr.bf16.mxu0 0
        %1032 = vmatpush1.bf16.xpose.msra.mxu0 0
        %1033 = vmatprep.subr.bf16.mxu0 0
        %1034 = vmatpush1.bf16.xpose.msra.mxu0 0
        %1035 = vmatprep.mubr.bf16.mxu0 0
        %1036 = vmatmul.mubr.bf16.gmra.mrb[0].mxu0 %v998
        %v1037 = vpop.f32.mrb[0].mxu0
        %v1038 = vadd.f32 0.0, %v1037
        %v1039 = vpop.f32.mrb[0].mxu0
        %v1040 = vpop.f32.mrb[0].mxu0
        %v1041 = vpop.f32.mrb[0].mxu0
        %1042 = vdwg.mxu0
        %1043 = vrot.lane.b32.xlu0 %v770, 120
        %v1044 = vpop.permute.xlu0 %1043
        %1045 = vrot.lane.b32.xlu0 %v770, 88
        %v1046 = vpop.permute.xlu0 %1045
        %v1048 = vsel %vm774, %v1044, 0
        %v1051 = vsel %vm774, %v1046, 0
        %1053 = vmatprep.subr.bf16.mxu0 0
        %1054 = vmatpush1.bf16.xpose.msra.mxu0 %v1051
        %1055 = vmatprep.subr.bf16.mxu0 0
        %1056 = vmatpush1.bf16.xpose.msra.mxu0 0
        %1057 = vmatprep.subr.bf16.mxu0 0
        %1058 = vmatpush1.bf16.xpose.msra.mxu0 0
        %1059 = vmatprep.subr.bf16.mxu0 0
        %1060 = vmatpush1.bf16.xpose.msra.mxu0 0
        %1061 = vmatprep.subr.bf16.mxu0 0
        %1062 = vmatpush1.bf16.xpose.msra.mxu0 0
        %1063 = vmatprep.subr.bf16.mxu0 0
        %1064 = vmatpush1.bf16.xpose.msra.mxu0 0
        %1065 = vmatprep.subr.bf16.mxu0 0
        %1066 = vmatpush1.bf16.xpose.msra.mxu0 0
        %1067 = vmatprep.subr.bf16.mxu0 0
        %1068 = vmatpush1.bf16.xpose.msra.mxu0 0
        %1069 = vmatprep.subr.bf16.mxu0 0
        %1070 = vmatpush1.bf16.xpose.msra.mxu0 0
        %1071 = vmatprep.subr.bf16.mxu0 0
        %1072 = vmatpush1.bf16.xpose.msra.mxu0 0
        %1073 = vmatprep.subr.bf16.mxu0 0
        %1074 = vmatpush1.bf16.xpose.msra.mxu0 0
        %1075 = vmatprep.subr.bf16.mxu0 0
        %1076 = vmatpush1.bf16.xpose.msra.mxu0 0
        %1077 = vmatprep.subr.bf16.mxu0 0
        %1078 = vmatpush1.bf16.xpose.msra.mxu0 0
        %1079 = vmatprep.subr.bf16.mxu0 0
        %1080 = vmatpush1.bf16.xpose.msra.mxu0 0
        %1081 = vmatprep.subr.bf16.mxu0 0
        %1082 = vmatpush1.bf16.xpose.msra.mxu0 0
        %1083 = vmatprep.subr.bf16.mxu0 0
        %1084 = vmatpush1.bf16.xpose.msra.mxu0 0
        %1085 = vmatprep.mubr.bf16.mxu0 0
        %1086 = vmatmul.mubr.bf16.gmra.mrb[0].mxu0 %v1048
        %v1087 = vpop.f32.mrb[0].mxu0
        %v1088 = vadd.f32 0.0, %v1087
        %v1089 = vpop.f32.mrb[0].mxu0
        %v1090 = vpop.f32.mrb[0].mxu0
        %v1091 = vpop.f32.mrb[0].mxu0
        %1092 = vdwg.mxu0
        %v1093 = vmul.f32 %v1038, 0.35355338
        %v1094 = vmul.f32 %v1088, 0.35355338
        %v1095 = vsel %vm774, %v1093, -inf
        %1096 = vmax.xlane.f32.xlu0 %v1095
        %v1097 = vpop.xlane.xlu0 %1096
        %v1098 = vsel %vm774, %v1094, -inf
        %1099 = vmax.xlane.f32.xlu0 %v1098
        %v1100 = vpop.xlane.xlu0 %1099
        %v1101 = vsub.f32 %v1093, %v1097
        %v1102 = vsub.f32 %v1094, %v1100
        %v1103 = vmul.f32 %v1101, 1.442695
        %v1104 = vpow.pop %v1103
        %v1105 = vmul.f32 %v1102, 1.442695
        %v1106 = vpow.pop %v1105
        %v1107 = vsel %vm774, %v1104, 0.0
        %1108 = vadd.xlane.f32.xlu0 %v1107
        %v1109 = vpop.xlane.xlu0 %1108
        %v1110 = vsel %vm774, %v1106, 0.0
        %1111 = vadd.xlane.f32.xlu0 %v1110
        %v1112 = vpop.xlane.xlu0 %1111
        %v1113 = vrcp.pop %v1109
        %v1114 = vrcp.pop %v1112
        %v1115 = vmul.f32 %v1104, %v1113
        %v1116 = vmul.f32 %v1106, %v1114
        %v1117 = vpack.c.bf16 %v1115, %v1115
        %v1118 = vpack.c.bf16 %v1116, %v1116
        %1119 = vrot.lane.b32.xlu0 %v769, 56
        %v1120 = vpop.permute.xlu0 %1119
        %v1122 = vsel %vm774, %v1117, 0
        %v1125 = vsel %vm901, %v1120, 0
        %1127 = vmatprep.subr.bf16.mxu0 0
        %1128 = vmatpush1.bf16.msra.mxu0 %v1125
        %1129 = vmatprep.subr.bf16.mxu0 0
        %1130 = vmatpush1.bf16.msra.mxu0 0
        %1131 = vmatprep.subr.bf16.mxu0 0
        %1132 = vmatpush1.bf16.msra.mxu0 0
        %1133 = vmatprep.subr.bf16.mxu0 0
        %1134 = vmatpush1.bf16.msra.mxu0 0
        %1135 = vmatprep.subr.bf16.mxu0 0
        %1136 = vmatpush1.bf16.msra.mxu0 0
        %1137 = vmatprep.subr.bf16.mxu0 0
        %1138 = vmatpush1.bf16.msra.mxu0 0
        %1139 = vmatprep.subr.bf16.mxu0 0
        %1140 = vmatpush1.bf16.msra.mxu0 0
        %1141 = vmatprep.subr.bf16.mxu0 0
        %1142 = vmatpush1.bf16.msra.mxu0 0
        %1143 = vmatprep.subr.bf16.mxu0 0
        %1144 = vmatpush1.bf16.msra.mxu0 0
        %1145 = vmatprep.subr.bf16.mxu0 0
        %1146 = vmatpush1.bf16.msra.mxu0 0
        %1147 = vmatprep.subr.bf16.mxu0 0
        %1148 = vmatpush1.bf16.msra.mxu0 0
        %1149 = vmatprep.subr.bf16.mxu0 0
        %1150 = vmatpush1.bf16.msra.mxu0 0
        %1151 = vmatprep.subr.bf16.mxu0 0
        %1152 = vmatpush1.bf16.msra.mxu0 0
        %1153 = vmatprep.subr.bf16.mxu0 0
        %1154 = vmatpush1.bf16.msra.mxu0 0
        %1155 = vmatprep.subr.bf16.mxu0 0
        %1156 = vmatpush1.bf16.msra.mxu0 0
        %1157 = vmatprep.subr.bf16.mxu0 0
        %1158 = vmatpush1.bf16.msra.mxu0 0
        %1159 = vmatprep.mubr.bf16.mxu0 0
        %1160 = vmatmul.mubr.bf16.gmra.mrb[0].mxu0 %v1122
        %v1161 = vpop.f32.mrb[0].mxu0
        %v1162 = vadd.f32 0.0, %v1161
        %v1163 = vpop.f32.mrb[0].mxu0
        %v1164 = vpop.f32.mrb[0].mxu0
        %v1165 = vpop.f32.mrb[0].mxu0
        %1166 = vdwg.mxu0
        %1167 = vrot.lane.b32.xlu0 %v770, 56
        %v1168 = vpop.permute.xlu0 %1167
        %v1170 = vsel %vm774, %v1118, 0
        %v1173 = vsel %vm901, %v1168, 0
        %1175 = vmatprep.subr.bf16.mxu0 0
        %1176 = vmatpush1.bf16.msra.mxu0 %v1173
        %1177 = vmatprep.subr.bf16.mxu0 0
        %1178 = vmatpush1.bf16.msra.mxu0 0
        %1179 = vmatprep.subr.bf16.mxu0 0
        %1180 = vmatpush1.bf16.msra.mxu0 0
        %1181 = vmatprep.subr.bf16.mxu0 0
        %1182 = vmatpush1.bf16.msra.mxu0 0
        %1183 = vmatprep.subr.bf16.mxu0 0
        %1184 = vmatpush1.bf16.msra.mxu0 0
        %1185 = vmatprep.subr.bf16.mxu0 0
        %1186 = vmatpush1.bf16.msra.mxu0 0
        %1187 = vmatprep.subr.bf16.mxu0 0
        %1188 = vmatpush1.bf16.msra.mxu0 0
        %1189 = vmatprep.subr.bf16.mxu0 0
        %1190 = vmatpush1.bf16.msra.mxu0 0
        %1191 = vmatprep.subr.bf16.mxu0 0
        %1192 = vmatpush1.bf16.msra.mxu0 0
        %1193 = vmatprep.subr.bf16.mxu0 0
        %1194 = vmatpush1.bf16.msra.mxu0 0
        %1195 = vmatprep.subr.bf16.mxu0 0
        %1196 = vmatpush1.bf16.msra.mxu0 0
        %1197 = vmatprep.subr.bf16.mxu0 0
        %1198 = vmatpush1.bf16.msra.mxu0 0
        %1199 = vmatprep.subr.bf16.mxu0 0
        %1200 = vmatpush1.bf16.msra.mxu0 0
        %1201 = vmatprep.subr.bf16.mxu0 0
        %1202 = vmatpush1.bf16.msra.mxu0 0
        %1203 = vmatprep.subr.bf16.mxu0 0
        %1204 = vmatpush1.bf16.msra.mxu0 0
        %1205 = vmatprep.subr.bf16.mxu0 0
        %1206 = vmatpush1.bf16.msra.mxu0 0
        %1207 = vmatprep.mubr.bf16.mxu0 0
        %1208 = vmatmul.mubr.bf16.gmra.mrb[0].mxu0 %v1170
        %v1209 = vpop.f32.mrb[0].mxu0
        %v1210 = vadd.f32 0.0, %v1209
        %v1211 = vpop.f32.mrb[0].mxu0
        %v1212 = vpop.f32.mrb[0].mxu0
        %v1213 = vpop.f32.mrb[0].mxu0
        %1214 = vdwg.mxu0
        %1215 = vrot.lane.b32.xlu0 %v769, 112
        %v1216 = vpop.permute.xlu0 %1215
        %1217 = vrot.lane.b32.xlu0 %v769, 80
        %v1218 = vpop.permute.xlu0 %1217
        %v1220 = vsel %vm774, %v1216, 0
        %v1223 = vsel %vm774, %v1218, 0
        %1225 = vmatprep.subr.bf16.mxu0 0
        %1226 = vmatpush1.bf16.xpose.msra.mxu0 %v1223
        %1227 = vmatprep.subr.bf16.mxu0 0
        %1228 = vmatpush1.bf16.xpose.msra.mxu0 0
        %1229 = vmatprep.subr.bf16.mxu0 0
        %1230 = vmatpush1.bf16.xpose.msra.mxu0 0
        %1231 = vmatprep.subr.bf16.mxu0 0
        %1232 = vmatpush1.bf16.xpose.msra.mxu0 0
        %1233 = vmatprep.subr.bf16.mxu0 0
        %1234 = vmatpush1.bf16.xpose.msra.mxu0 0
        %1235 = vmatprep.subr.bf16.mxu0 0
        %1236 = vmatpush1.bf16.xpose.msra.mxu0 0
        %1237 = vmatprep.subr.bf16.mxu0 0
        %1238 = vmatpush1.bf16.xpose.msra.mxu0 0
        %1239 = vmatprep.subr.bf16.mxu0 0
        %1240 = vmatpush1.bf16.xpose.msra.mxu0 0
        %1241 = vmatprep.subr.bf16.mxu0 0
        %1242 = vmatpush1.bf16.xpose.msra.mxu0 0
        %1243 = vmatprep.subr.bf16.mxu0 0
        %1244 = vmatpush1.bf16.xpose.msra.mxu0 0
        %1245 = vmatprep.subr.bf16.mxu0 0
        %1246 = vmatpush1.bf16.xpose.msra.mxu0 0
        %1247 = vmatprep.subr.bf16.mxu0 0
        %1248 = vmatpush1.bf16.xpose.msra.mxu0 0
        %1249 = vmatprep.subr.bf16.mxu0 0
        %1250 = vmatpush1.bf16.xpose.msra.mxu0 0
        %1251 = vmatprep.subr.bf16.mxu0 0
        %1252 = vmatpush1.bf16.xpose.msra.mxu0 0
        %1253 = vmatprep.subr.bf16.mxu0 0
        %1254 = vmatpush1.bf16.xpose.msra.mxu0 0
        %1255 = vmatprep.subr.bf16.mxu0 0
        %1256 = vmatpush1.bf16.xpose.msra.mxu0 0
        %1257 = vmatprep.mubr.bf16.mxu0 0
        %1258 = vmatmul.mubr.bf16.gmra.mrb[0].mxu0 %v1220
        %v1259 = vpop.f32.mrb[0].mxu0
        %v1260 = vadd.f32 0.0, %v1259
        %v1261 = vpop.f32.mrb[0].mxu0
        %v1262 = vpop.f32.mrb[0].mxu0
        %v1263 = vpop.f32.mrb[0].mxu0
        %1264 = vdwg.mxu0
        %1265 = vrot.lane.b32.xlu0 %v770, 112
        %v1266 = vpop.permute.xlu0 %1265
        %1267 = vrot.lane.b32.xlu0 %v770, 80
        %v1268 = vpop.permute.xlu0 %1267
        %v1270 = vsel %vm774, %v1266, 0
        %v1273 = vsel %vm774, %v1268, 0
        %1275 = vmatprep.subr.bf16.mxu0 0
        %1276 = vmatpush1.bf16.xpose.msra.mxu0 %v1273
        %1277 = vmatprep.subr.bf16.mxu0 0
        %1278 = vmatpush1.bf16.xpose.msra.mxu0 0
        %1279 = vmatprep.subr.bf16.mxu0 0
        %1280 = vmatpush1.bf16.xpose.msra.mxu0 0
        %1281 = vmatprep.subr.bf16.mxu0 0
        %1282 = vmatpush1.bf16.xpose.msra.mxu0 0
        %1283 = vmatprep.subr.bf16.mxu0 0
        %1284 = vmatpush1.bf16.xpose.msra.mxu0 0
        %1285 = vmatprep.subr.bf16.mxu0 0
        %1286 = vmatpush1.bf16.xpose.msra.mxu0 0
        %1287 = vmatprep.subr.bf16.mxu0 0
        %1288 = vmatpush1.bf16.xpose.msra.mxu0 0
        %1289 = vmatprep.subr.bf16.mxu0 0
        %1290 = vmatpush1.bf16.xpose.msra.mxu0 0
        %1291 = vmatprep.subr.bf16.mxu0 0
        %1292 = vmatpush1.bf16.xpose.msra.mxu0 0
        %1293 = vmatprep.subr.bf16.mxu0 0
        %1294 = vmatpush1.bf16.xpose.msra.mxu0 0
        %1295 = vmatprep.subr.bf16.mxu0 0
        %1296 = vmatpush1.bf16.xpose.msra.mxu0 0
        %1297 = vmatprep.subr.bf16.mxu0 0
        %1298 = vmatpush1.bf16.xpose.msra.mxu0 0
        %1299 = vmatprep.subr.bf16.mxu0 0
        %1300 = vmatpush1.bf16.xpose.msra.mxu0 0
        %1301 = vmatprep.subr.bf16.mxu0 0
        %1302 = vmatpush1.bf16.xpose.msra.mxu0 0
        %1303 = vmatprep.subr.bf16.mxu0 0
        %1304 = vmatpush1.bf16.xpose.msra.mxu0 0
        %1305 = vmatprep.subr.bf16.mxu0 0
        %1306 = vmatpush1.bf16.xpose.msra.mxu0 0
        %1307 = vmatprep.mubr.bf16.mxu0 0
        %1308 = vmatmul.mubr.bf16.gmra.mrb[0].mxu0 %v1270
        %v1309 = vpop.f32.mrb[0].mxu0
        %v1310 = vadd.f32 0.0, %v1309
        %v1311 = vpop.f32.mrb[0].mxu0
        %v1312 = vpop.f32.mrb[0].mxu0
        %v1313 = vpop.f32.mrb[0].mxu0
        %1314 = vdwg.mxu0
        %v1315 = vmul.f32 %v1260, 0.35355338
        %v1316 = vmul.f32 %v1310, 0.35355338
        %v1317 = vsel %vm774, %v1315, -inf
        %1318 = vmax.xlane.f32.xlu0 %v1317
        %v1319 = vpop.xlane.xlu0 %1318
        %v1320 = vsel %vm774, %v1316, -inf
        %1321 = vmax.xlane.f32.xlu0 %v1320
        %v1322 = vpop.xlane.xlu0 %1321
        %v1323 = vsub.f32 %v1315, %v1319
        %v1324 = vsub.f32 %v1316, %v1322
        %v1325 = vmul.f32 %v1323, 1.442695
        %v1326 = vpow.pop %v1325
        %v1327 = vmul.f32 %v1324, 1.442695
        %v1328 = vpow.pop %v1327
        %v1329 = vsel %vm774, %v1326, 0.0
        %1330 = vadd.xlane.f32.xlu0 %v1329
        %v1331 = vpop.xlane.xlu0 %1330
        %v1332 = vsel %vm774, %v1328, 0.0
        %1333 = vadd.xlane.f32.xlu0 %v1332
        %v1334 = vpop.xlane.xlu0 %1333
        %v1335 = vrcp.pop %v1331
        %v1336 = vrcp.pop %v1334
        %v1337 = vmul.f32 %v1326, %v1335
        %v1338 = vmul.f32 %v1328, %v1336
        %v1339 = vpack.c.bf16 %v1337, %v1337
        %v1340 = vpack.c.bf16 %v1338, %v1338
        %1341 = vrot.lane.b32.xlu0 %v769, 48
        %v1342 = vpop.permute.xlu0 %1341
        %v1344 = vsel %vm774, %v1339, 0
        %v1347 = vsel %vm901, %v1342, 0
        %1349 = vmatprep.subr.bf16.mxu0 0
        %1350 = vmatpush1.bf16.msra.mxu0 %v1347
        %1351 = vmatprep.subr.bf16.mxu0 0
        %1352 = vmatpush1.bf16.msra.mxu0 0
        %1353 = vmatprep.subr.bf16.mxu0 0
        %1354 = vmatpush1.bf16.msra.mxu0 0
        %1355 = vmatprep.subr.bf16.mxu0 0
        %1356 = vmatpush1.bf16.msra.mxu0 0
        %1357 = vmatprep.subr.bf16.mxu0 0
        %1358 = vmatpush1.bf16.msra.mxu0 0
        %1359 = vmatprep.subr.bf16.mxu0 0
        %1360 = vmatpush1.bf16.msra.mxu0 0
        %1361 = vmatprep.subr.bf16.mxu0 0
        %1362 = vmatpush1.bf16.msra.mxu0 0
        %1363 = vmatprep.subr.bf16.mxu0 0
        %1364 = vmatpush1.bf16.msra.mxu0 0
        %1365 = vmatprep.subr.bf16.mxu0 0
        %1366 = vmatpush1.bf16.msra.mxu0 0
        %1367 = vmatprep.subr.bf16.mxu0 0
        %1368 = vmatpush1.bf16.msra.mxu0 0
        %1369 = vmatprep.subr.bf16.mxu0 0
        %1370 = vmatpush1.bf16.msra.mxu0 0
        %1371 = vmatprep.subr.bf16.mxu0 0
        %1372 = vmatpush1.bf16.msra.mxu0 0
        %1373 = vmatprep.subr.bf16.mxu0 0
        %1374 = vmatpush1.bf16.msra.mxu0 0
        %1375 = vmatprep.subr.bf16.mxu0 0
        %1376 = vmatpush1.bf16.msra.mxu0 0
        %1377 = vmatprep.subr.bf16.mxu0 0
        %1378 = vmatpush1.bf16.msra.mxu0 0
        %1379 = vmatprep.subr.bf16.mxu0 0
        %1380 = vmatpush1.bf16.msra.mxu0 0
        %1381 = vmatprep.mubr.bf16.mxu0 0
        %1382 = vmatmul.mubr.bf16.gmra.mrb[0].mxu0 %v1344
        %v1383 = vpop.f32.mrb[0].mxu0
        %v1384 = vadd.f32 0.0, %v1383
        %v1385 = vpop.f32.mrb[0].mxu0
        %v1386 = vpop.f32.mrb[0].mxu0
        %v1387 = vpop.f32.mrb[0].mxu0
        %1388 = vdwg.mxu0
        %1389 = vrot.lane.b32.xlu0 %v770, 48
        %v1390 = vpop.permute.xlu0 %1389
        %v1392 = vsel %vm774, %v1340, 0
        %v1395 = vsel %vm901, %v1390, 0
        %1397 = vmatprep.subr.bf16.mxu0 0
        %1398 = vmatpush1.bf16.msra.mxu0 %v1395
        %1399 = vmatprep.subr.bf16.mxu0 0
        %1400 = vmatpush1.bf16.msra.mxu0 0
        %1401 = vmatprep.subr.bf16.mxu0 0
        %1402 = vmatpush1.bf16.msra.mxu0 0
        %1403 = vmatprep.subr.bf16.mxu0 0
        %1404 = vmatpush1.bf16.msra.mxu0 0
        %1405 = vmatprep.subr.bf16.mxu0 0
        %1406 = vmatpush1.bf16.msra.mxu0 0
        %1407 = vmatprep.subr.bf16.mxu0 0
        %1408 = vmatpush1.bf16.msra.mxu0 0
        %1409 = vmatprep.subr.bf16.mxu0 0
        %1410 = vmatpush1.bf16.msra.mxu0 0
        %1411 = vmatprep.subr.bf16.mxu0 0
        %1412 = vmatpush1.bf16.msra.mxu0 0
        %1413 = vmatprep.subr.bf16.mxu0 0
        %1414 = vmatpush1.bf16.msra.mxu0 0
        %1415 = vmatprep.subr.bf16.mxu0 0
        %1416 = vmatpush1.bf16.msra.mxu0 0
        %1417 = vmatprep.subr.bf16.mxu0 0
        %1418 = vmatpush1.bf16.msra.mxu0 0
        %1419 = vmatprep.subr.bf16.mxu0 0
        %1420 = vmatpush1.bf16.msra.mxu0 0
        %1421 = vmatprep.subr.bf16.mxu0 0
        %1422 = vmatpush1.bf16.msra.mxu0 0
        %1423 = vmatprep.subr.bf16.mxu0 0
        %1424 = vmatpush1.bf16.msra.mxu0 0
        %1425 = vmatprep.subr.bf16.mxu0 0
        %1426 = vmatpush1.bf16.msra.mxu0 0
        %1427 = vmatprep.subr.bf16.mxu0 0
        %1428 = vmatpush1.bf16.msra.mxu0 0
        %1429 = vmatprep.mubr.bf16.mxu0 0
        %1430 = vmatmul.mubr.bf16.gmra.mrb[0].mxu0 %v1392
        %v1431 = vpop.f32.mrb[0].mxu0
        %v1432 = vadd.f32 0.0, %v1431
        %v1433 = vpop.f32.mrb[0].mxu0
        %v1434 = vpop.f32.mrb[0].mxu0
        %v1435 = vpop.f32.mrb[0].mxu0
        %1436 = vdwg.mxu0
        %1437 = vrot.lane.b32.xlu0 %v769, 104
        %v1438 = vpop.permute.xlu0 %1437
        %1439 = vrot.lane.b32.xlu0 %v769, 72
        %v1440 = vpop.permute.xlu0 %1439
        %v1442 = vsel %vm774, %v1438, 0
        %v1445 = vsel %vm774, %v1440, 0
        %1447 = vmatprep.subr.bf16.mxu0 0
        %1448 = vmatpush1.bf16.xpose.msra.mxu0 %v1445
        %1449 = vmatprep.subr.bf16.mxu0 0
        %1450 = vmatpush1.bf16.xpose.msra.mxu0 0
        %1451 = vmatprep.subr.bf16.mxu0 0
        %1452 = vmatpush1.bf16.xpose.msra.mxu0 0
        %1453 = vmatprep.subr.bf16.mxu0 0
        %1454 = vmatpush1.bf16.xpose.msra.mxu0 0
        %1455 = vmatprep.subr.bf16.mxu0 0
        %1456 = vmatpush1.bf16.xpose.msra.mxu0 0
        %1457 = vmatprep.subr.bf16.mxu0 0
        %1458 = vmatpush1.bf16.xpose.msra.mxu0 0
        %1459 = vmatprep.subr.bf16.mxu0 0
        %1460 = vmatpush1.bf16.xpose.msra.mxu0 0
        %1461 = vmatprep.subr.bf16.mxu0 0
        %1462 = vmatpush1.bf16.xpose.msra.mxu0 0
        %1463 = vmatprep.subr.bf16.mxu0 0
        %1464 = vmatpush1.bf16.xpose.msra.mxu0 0
        %1465 = vmatprep.subr.bf16.mxu0 0
        %1466 = vmatpush1.bf16.xpose.msra.mxu0 0
        %1467 = vmatprep.subr.bf16.mxu0 0
        %1468 = vmatpush1.bf16.xpose.msra.mxu0 0
        %1469 = vmatprep.subr.bf16.mxu0 0
        %1470 = vmatpush1.bf16.xpose.msra.mxu0 0
        %1471 = vmatprep.subr.bf16.mxu0 0
        %1472 = vmatpush1.bf16.xpose.msra.mxu0 0
        %1473 = vmatprep.subr.bf16.mxu0 0
        %1474 = vmatpush1.bf16.xpose.msra.mxu0 0
        %1475 = vmatprep.subr.bf16.mxu0 0
        %1476 = vmatpush1.bf16.xpose.msra.mxu0 0
        %1477 = vmatprep.subr.bf16.mxu0 0
        %1478 = vmatpush1.bf16.xpose.msra.mxu0 0
        %1479 = vmatprep.mubr.bf16.mxu0 0
        %1480 = vmatmul.mubr.bf16.gmra.mrb[0].mxu0 %v1442
        %v1481 = vpop.f32.mrb[0].mxu0
        %v1482 = vadd.f32 0.0, %v1481
        %v1483 = vpop.f32.mrb[0].mxu0
        %v1484 = vpop.f32.mrb[0].mxu0
        %v1485 = vpop.f32.mrb[0].mxu0
        %1486 = vdwg.mxu0
        %1487 = vrot.lane.b32.xlu0 %v770, 104
        %v1488 = vpop.permute.xlu0 %1487
        %1489 = vrot.lane.b32.xlu0 %v770, 72
        %v1490 = vpop.permute.xlu0 %1489
        %v1492 = vsel %vm774, %v1488, 0
        %v1495 = vsel %vm774, %v1490, 0
        %1497 = vmatprep.subr.bf16.mxu0 0
        %1498 = vmatpush1.bf16.xpose.msra.mxu0 %v1495
        %1499 = vmatprep.subr.bf16.mxu0 0
        %1500 = vmatpush1.bf16.xpose.msra.mxu0 0
        %1501 = vmatprep.subr.bf16.mxu0 0
        %1502 = vmatpush1.bf16.xpose.msra.mxu0 0
        %1503 = vmatprep.subr.bf16.mxu0 0
        %1504 = vmatpush1.bf16.xpose.msra.mxu0 0
        %1505 = vmatprep.subr.bf16.mxu0 0
        %1506 = vmatpush1.bf16.xpose.msra.mxu0 0
        %1507 = vmatprep.subr.bf16.mxu0 0
        %1508 = vmatpush1.bf16.xpose.msra.mxu0 0
        %1509 = vmatprep.subr.bf16.mxu0 0
        %1510 = vmatpush1.bf16.xpose.msra.mxu0 0
        %1511 = vmatprep.subr.bf16.mxu0 0
        %1512 = vmatpush1.bf16.xpose.msra.mxu0 0
        %1513 = vmatprep.subr.bf16.mxu0 0
        %1514 = vmatpush1.bf16.xpose.msra.mxu0 0
        %1515 = vmatprep.subr.bf16.mxu0 0
        %1516 = vmatpush1.bf16.xpose.msra.mxu0 0
        %1517 = vmatprep.subr.bf16.mxu0 0
        %1518 = vmatpush1.bf16.xpose.msra.mxu0 0
        %1519 = vmatprep.subr.bf16.mxu0 0
        %1520 = vmatpush1.bf16.xpose.msra.mxu0 0
        %1521 = vmatprep.subr.bf16.mxu0 0
        %1522 = vmatpush1.bf16.xpose.msra.mxu0 0
        %1523 = vmatprep.subr.bf16.mxu0 0
        %1524 = vmatpush1.bf16.xpose.msra.mxu0 0
        %1525 = vmatprep.subr.bf16.mxu0 0
        %1526 = vmatpush1.bf16.xpose.msra.mxu0 0
        %1527 = vmatprep.subr.bf16.mxu0 0
        %1528 = vmatpush1.bf16.xpose.msra.mxu0 0
        %1529 = vmatprep.mubr.bf16.mxu0 0
        %1530 = vmatmul.mubr.bf16.gmra.mrb[0].mxu0 %v1492
        %v1531 = vpop.f32.mrb[0].mxu0
        %v1532 = vadd.f32 0.0, %v1531
        %v1533 = vpop.f32.mrb[0].mxu0
        %v1534 = vpop.f32.mrb[0].mxu0
        %v1535 = vpop.f32.mrb[0].mxu0
        %1536 = vdwg.mxu0
        %v1537 = vmul.f32 %v1482, 0.35355338
        %v1538 = vmul.f32 %v1532, 0.35355338
        %v1539 = vsel %vm774, %v1537, -inf
        %1540 = vmax.xlane.f32.xlu0 %v1539
        %v1541 = vpop.xlane.xlu0 %1540
        %v1542 = vsel %vm774, %v1538, -inf
        %1543 = vmax.xlane.f32.xlu0 %v1542
        %v1544 = vpop.xlane.xlu0 %1543
        %v1545 = vsub.f32 %v1537, %v1541
        %v1546 = vsub.f32 %v1538, %v1544
        %v1547 = vmul.f32 %v1545, 1.442695
        %v1548 = vpow.pop %v1547
        %v1549 = vmul.f32 %v1546, 1.442695
        %v1550 = vpow.pop %v1549
        %v1551 = vsel %vm774, %v1548, 0.0
        %1552 = vadd.xlane.f32.xlu0 %v1551
        %v1553 = vpop.xlane.xlu0 %1552
        %v1554 = vsel %vm774, %v1550, 0.0
        %1555 = vadd.xlane.f32.xlu0 %v1554
        %v1556 = vpop.xlane.xlu0 %1555
        %v1557 = vrcp.pop %v1553
        %v1558 = vrcp.pop %v1556
        %v1559 = vmul.f32 %v1548, %v1557
        %v1560 = vmul.f32 %v1550, %v1558
        %v1561 = vpack.c.bf16 %v1559, %v1559
        %v1562 = vpack.c.bf16 %v1560, %v1560
        %1563 = vrot.lane.b32.xlu0 %v769, 40
        %v1564 = vpop.permute.xlu0 %1563
        %v1566 = vsel %vm774, %v1561, 0
        %v1569 = vsel %vm901, %v1564, 0
        %1571 = vmatprep.subr.bf16.mxu0 0
        %1572 = vmatpush1.bf16.msra.mxu0 %v1569
        %1573 = vmatprep.subr.bf16.mxu0 0
        %1574 = vmatpush1.bf16.msra.mxu0 0
        %1575 = vmatprep.subr.bf16.mxu0 0
        %1576 = vmatpush1.bf16.msra.mxu0 0
        %1577 = vmatprep.subr.bf16.mxu0 0
        %1578 = vmatpush1.bf16.msra.mxu0 0
        %1579 = vmatprep.subr.bf16.mxu0 0
        %1580 = vmatpush1.bf16.msra.mxu0 0
        %1581 = vmatprep.subr.bf16.mxu0 0
        %1582 = vmatpush1.bf16.msra.mxu0 0
        %1583 = vmatprep.subr.bf16.mxu0 0
        %1584 = vmatpush1.bf16.msra.mxu0 0
        %1585 = vmatprep.subr.bf16.mxu0 0
        %1586 = vmatpush1.bf16.msra.mxu0 0
        %1587 = vmatprep.subr.bf16.mxu0 0
        %1588 = vmatpush1.bf16.msra.mxu0 0
        %1589 = vmatprep.subr.bf16.mxu0 0
        %1590 = vmatpush1.bf16.msra.mxu0 0
        %1591 = vmatprep.subr.bf16.mxu0 0
        %1592 = vmatpush1.bf16.msra.mxu0 0
        %1593 = vmatprep.subr.bf16.mxu0 0
        %1594 = vmatpush1.bf16.msra.mxu0 0
        %1595 = vmatprep.subr.bf16.mxu0 0
        %1596 = vmatpush1.bf16.msra.mxu0 0
        %1597 = vmatprep.subr.bf16.mxu0 0
        %1598 = vmatpush1.bf16.msra.mxu0 0
        %1599 = vmatprep.subr.bf16.mxu0 0
        %1600 = vmatpush1.bf16.msra.mxu0 0
        %1601 = vmatprep.subr.bf16.mxu0 0
        %1602 = vmatpush1.bf16.msra.mxu0 0
        %1603 = vmatprep.mubr.bf16.mxu0 0
        %1604 = vmatmul.mubr.bf16.gmra.mrb[0].mxu0 %v1566
        %v1605 = vpop.f32.mrb[0].mxu0
        %v1606 = vadd.f32 0.0, %v1605
        %v1607 = vpop.f32.mrb[0].mxu0
        %v1608 = vpop.f32.mrb[0].mxu0
        %v1609 = vpop.f32.mrb[0].mxu0
        %1610 = vdwg.mxu0
        %1611 = vrot.lane.b32.xlu0 %v770, 40
        %v1612 = vpop.permute.xlu0 %1611
        %v1614 = vsel %vm774, %v1562, 0
        %v1617 = vsel %vm901, %v1612, 0
        %1619 = vmatprep.subr.bf16.mxu0 0
        %1620 = vmatpush1.bf16.msra.mxu0 %v1617
        %1621 = vmatprep.subr.bf16.mxu0 0
        %1622 = vmatpush1.bf16.msra.mxu0 0
        %1623 = vmatprep.subr.bf16.mxu0 0
        %1624 = vmatpush1.bf16.msra.mxu0 0
        %1625 = vmatprep.subr.bf16.mxu0 0
        %1626 = vmatpush1.bf16.msra.mxu0 0
        %1627 = vmatprep.subr.bf16.mxu0 0
        %1628 = vmatpush1.bf16.msra.mxu0 0
        %1629 = vmatprep.subr.bf16.mxu0 0
        %1630 = vmatpush1.bf16.msra.mxu0 0
        %1631 = vmatprep.subr.bf16.mxu0 0
        %1632 = vmatpush1.bf16.msra.mxu0 0
        %1633 = vmatprep.subr.bf16.mxu0 0
        %1634 = vmatpush1.bf16.msra.mxu0 0
        %1635 = vmatprep.subr.bf16.mxu0 0
        %1636 = vmatpush1.bf16.msra.mxu0 0
        %1637 = vmatprep.subr.bf16.mxu0 0
        %1638 = vmatpush1.bf16.msra.mxu0 0
        %1639 = vmatprep.subr.bf16.mxu0 0
        %1640 = vmatpush1.bf16.msra.mxu0 0
        %1641 = vmatprep.subr.bf16.mxu0 0
        %1642 = vmatpush1.bf16.msra.mxu0 0
        %1643 = vmatprep.subr.bf16.mxu0 0
        %1644 = vmatpush1.bf16.msra.mxu0 0
        %1645 = vmatprep.subr.bf16.mxu0 0
        %1646 = vmatpush1.bf16.msra.mxu0 0
        %1647 = vmatprep.subr.bf16.mxu0 0
        %1648 = vmatpush1.bf16.msra.mxu0 0
        %1649 = vmatprep.subr.bf16.mxu0 0
        %1650 = vmatpush1.bf16.msra.mxu0 0
        %1651 = vmatprep.mubr.bf16.mxu0 0
        %1652 = vmatmul.mubr.bf16.gmra.mrb[0].mxu0 %v1614
        %v1653 = vpop.f32.mrb[0].mxu0
        %v1654 = vadd.f32 0.0, %v1653
        %v1655 = vpop.f32.mrb[0].mxu0
        %v1656 = vpop.f32.mrb[0].mxu0
        %v1657 = vpop.f32.mrb[0].mxu0
        %1658 = vdwg.mxu0
        %1661 = vrot.lane.b32.xlu0 %v1162, 8
        %v1662 = vpop.permute.xlu0 %1661
        %1663 = vrot.lane.b32.xlu0 %v1210, 8
        %v1664 = vpop.permute.xlu0 %1663
        %1669 = vrot.lane.b32.xlu0 %v1384, 16
        %v1670 = vpop.permute.xlu0 %1669
        %1671 = vrot.lane.b32.xlu0 %v1432, 16
        %v1672 = vpop.permute.xlu0 %1671
        %1677 = vrot.lane.b32.xlu0 %v1606, 24
        %v1678 = vpop.permute.xlu0 %1677
        %1679 = vrot.lane.b32.xlu0 %v1654, 24
        %v1680 = vpop.permute.xlu0 %1679
        %v1683 = vsel %vm774, %v940, %v1662
        %v1684 = vsel %vm774, %v988, %v1664
        %vm1685 = vcmask 130048
        %v1686 = vsel %vm1685, %v1683, %v1670
        %v1687 = vsel %vm1685, %v1684, %v1672
        %vm1688 = vcmask 195584
        %v1689 = vsel %vm1688, %v1686, %v1678
        %v1690 = vsel %vm1688, %v1687, %v1680
        %v1691 = vpack.c.bf16 %v1690, %v1689
        %v1692 = vld [vmem:[%s668] sm:$0xf]
        %v1693 = vld [vmem:[%s668 + $0x4] sm:$0xf]
        %v1694 = vld [vmem:[%s668 + $0x8] sm:$0xf]
        %v1695 = vld [vmem:[%s668 + $0xc] sm:$0xf]
        %v1696 = vld [vmem:[%s551] sm:$0x1]
        %v1698 = vlaneseq
        %v1699 = vshrl.u32 %v1698, 7
        %v1700 = vsub.s32 0, %v1699
        %v1701 = vrot.slane %v1696, %v1700
        %v1707 = vunpack.c.l.b16 %v1692
        %v1708 = vunpack.c.l.b16 %v1693
        %v1709 = vunpack.c.l.b16 %v1694
        %v1710 = vunpack.c.l.b16 %v1695
        %v1711 = vpack.c.b16 %v1708, %v1707
        %v1712 = vpack.c.b16 %v1710, %v1709
        %v1716 = vsel %vm724, %v1691, 0
        %1718 = vmatprep.subr.bf16.mxu0 0
        %1719 = vmatpush1.bf16.msra.mxu0 %v1711
        %1720 = vmatprep.subr.bf16.mxu0 0
        %1721 = vmatpush1.bf16.msra.mxu0 %v1712
        %1722 = vmatprep.subr.bf16.mxu0 0
        %1723 = vmatpush1.bf16.msra.mxu0 0
        %1724 = vmatprep.subr.bf16.mxu0 0
        %1725 = vmatpush1.bf16.msra.mxu0 0
        %1726 = vmatprep.subr.bf16.mxu0 0
        %1727 = vmatpush1.bf16.msra.mxu0 0
        %1728 = vmatprep.subr.bf16.mxu0 0
        %1729 = vmatpush1.bf16.msra.mxu0 0
        %1730 = vmatprep.subr.bf16.mxu0 0
        %1731 = vmatpush1.bf16.msra.mxu0 0
        %1732 = vmatprep.subr.bf16.mxu0 0
        %1733 = vmatpush1.bf16.msra.mxu0 0
        %1734 = vmatprep.subr.bf16.mxu0 0
        %1735 = vmatpush1.bf16.msra.mxu0 0
        %1736 = vmatprep.subr.bf16.mxu0 0
        %1737 = vmatpush1.bf16.msra.mxu0 0
        %1738 = vmatprep.subr.bf16.mxu0 0
        %1739 = vmatpush1.bf16.msra.mxu0 0
        %1740 = vmatprep.subr.bf16.mxu0 0
        %1741 = vmatpush1.bf16.msra.mxu0 0
        %1742 = vmatprep.subr.bf16.mxu0 0
        %1743 = vmatpush1.bf16.msra.mxu0 0
        %1744 = vmatprep.subr.bf16.mxu0 0
        %1745 = vmatpush1.bf16.msra.mxu0 0
        %1746 = vmatprep.subr.bf16.mxu0 0
        %1747 = vmatpush1.bf16.msra.mxu0 0
        %1748 = vmatprep.subr.bf16.mxu0 0
        %1749 = vmatpush1.bf16.msra.mxu0 0
        %1750 = vmatprep.mubr.bf16.mxu0 0
        %1751 = vmatmul.mubr.bf16.gmra.mrb[0].mxu0 %v1716
        %v1752 = vpop.f32.mrb[0].mxu0
        %v1753 = vadd.f32 %v1701, %v1752
        %v1754 = vpop.f32.mrb[0].mxu0
        %v1755 = vpop.f32.mrb[0].mxu0
        %v1756 = vadd.f32 %v1701, %v1755
        %v1757 = vpop.f32.mrb[0].mxu0
        %1758 = vdwg.mxu0
        %v1759 = vadd.f32 %v1753, %v698
        %v1760 = vadd.f32 %v1756, %v699
        %v1761 = vld [vmem:[%s559] sm:$0x1]
        %v1762 = vld [vmem:[%s567] sm:$0x1]
        %v1763 = vsel %vm724, %v1759, 0.0
        %1764 = vadd.xlane.f32.xlu0 %v1763
        %v1765 = vpop.xlane.xlu0 %1764
        %v1766 = vsel %vm724, %v1760, 0.0
        %1767 = vadd.xlane.f32.xlu0 %v1766
        %v1768 = vpop.xlane.xlu0 %1767
        %v1769 = vrcp.pop 32.0
        %v1770 = vmul.f32 %v1765, %v1769
        %v1771 = vmul.f32 %v1768, %v1769
        %v1772 = vsub.f32 %v1759, %v1770
        %v1773 = vsub.f32 %v1760, %v1771
        %v1774 = vmul.f32 %v1772, %v1772
        %v1775 = vmul.f32 %v1773, %v1773
        %v1776 = vsel %vm724, %v1774, 0.0
        %1777 = vadd.xlane.f32.xlu0 %v1776
        %v1778 = vpop.xlane.xlu0 %1777
        %v1779 = vsel %vm724, %v1775, 0.0
        %1780 = vadd.xlane.f32.xlu0 %v1779
        %v1781 = vpop.xlane.xlu0 %1780
        %v1782 = vmul.f32 %v1778, %v1769
        %v1783 = vmul.f32 %v1781, %v1769
        %v1784 = vadd.f32 %v1782, 1e-05
        %v1785 = vadd.f32 %v1783, 1e-05
        %v1786 = vrsqrt.pop %v1784
        %v1787 = vrsqrt.pop %v1785
        %v1788 = vmul.f32 %v1772, %v1786
        %v1789 = vmul.f32 %v1773, %v1787
        %v1791 = vlaneseq
        %v1792 = vshrl.u32 %v1791, 7
        %v1793 = vsub.s32 0, %v1792
        %v1794 = vrot.slane %v1761, %v1793
        %v1796 = vmul.f32 %v1788, %v1794
        %v1797 = vmul.f32 %v1789, %v1794
        %v1799 = vlaneseq
        %v1800 = vshrl.u32 %v1799, 7
        %v1801 = vsub.s32 0, %v1800
        %v1802 = vrot.slane %v1762, %v1801
        %v1804 = vadd.f32 %v1796, %v1802
        %v1805 = vadd.f32 %v1797, %v1802
        %v1806 = vpack.c.bf16 %v1805, %v1804
        %v1807 = vld [vmem:[%s673] sm:$0xf]
        %v1808 = vld [vmem:[%s673 + $0x4] sm:$0xf]
        %v1809 = vld [vmem:[%s673 + $0x8] sm:$0xf]
        %v1810 = vld [vmem:[%s673 + $0xc] sm:$0xf]
        %v1811 = vld [vmem:[%s575] sm:$0x1]
        %v1813 = vlaneseq
        %v1814 = vshrl.u32 %v1813, 7
        %v1815 = vsub.s32 0, %v1814
        %v1816 = vrot.slane %v1811, %v1815
        %v1822 = vunpack.c.l.b16 %v1807
        %v1823 = vunpack.c.l.b16 %v1808
        %v1824 = vunpack.c.l.b16 %v1809
        %v1825 = vunpack.c.l.b16 %v1810
        %v1826 = vpack.c.b16 %v1823, %v1822
        %v1827 = vpack.c.b16 %v1825, %v1824
        %v1831 = vsel %vm724, %v1806, 0
        %1833 = vmatprep.subr.bf16.mxu0 0
        %1834 = vmatpush1.bf16.msra.mxu0 %v1826
        %1835 = vmatprep.subr.bf16.mxu0 0
        %1836 = vmatpush1.bf16.msra.mxu0 %v1827
        %1837 = vmatprep.subr.bf16.mxu0 0
        %1838 = vmatpush1.bf16.msra.mxu0 0
        %1839 = vmatprep.subr.bf16.mxu0 0
        %1840 = vmatpush1.bf16.msra.mxu0 0
        %1841 = vmatprep.subr.bf16.mxu0 0
        %1842 = vmatpush1.bf16.msra.mxu0 0
        %1843 = vmatprep.subr.bf16.mxu0 0
        %1844 = vmatpush1.bf16.msra.mxu0 0
        %1845 = vmatprep.subr.bf16.mxu0 0
        %1846 = vmatpush1.bf16.msra.mxu0 0
        %1847 = vmatprep.subr.bf16.mxu0 0
        %1848 = vmatpush1.bf16.msra.mxu0 0
        %1849 = vmatprep.subr.bf16.mxu0 0
        %1850 = vmatpush1.bf16.msra.mxu0 0
        %1851 = vmatprep.subr.bf16.mxu0 0
        %1852 = vmatpush1.bf16.msra.mxu0 0
        %1853 = vmatprep.subr.bf16.mxu0 0
        %1854 = vmatpush1.bf16.msra.mxu0 0
        %1855 = vmatprep.subr.bf16.mxu0 0
        %1856 = vmatpush1.bf16.msra.mxu0 0
        %1857 = vmatprep.subr.bf16.mxu0 0
        %1858 = vmatpush1.bf16.msra.mxu0 0
        %1859 = vmatprep.subr.bf16.mxu0 0
        %1860 = vmatpush1.bf16.msra.mxu0 0
        %1861 = vmatprep.subr.bf16.mxu0 0
        %1862 = vmatpush1.bf16.msra.mxu0 0
        %1863 = vmatprep.subr.bf16.mxu0 0
        %1864 = vmatpush1.bf16.msra.mxu0 0
        %1865 = vmatprep.mubr.bf16.mxu0 0
        %1866 = vmatmul.mubr.bf16.gmra.mrb[0].mxu0 %v1831
        %v1867 = vpop.f32.mrb[0].mxu0
        %v1868 = vadd.f32 %v1816, %v1867
        %v1869 = vpop.f32.mrb[0].mxu0
        %v1870 = vpop.f32.mrb[0].mxu0
        %v1871 = vadd.f32 %v1816, %v1870
        %v1872 = vpop.f32.mrb[0].mxu0
        %1873 = vdwg.mxu0
        %v1874 = vmax.f32 %v1868, 0.0
        %v1875 = vmax.f32 %v1871, 0.0
        %v1876 = vpack.c.bf16 %v1875, %v1874
        %v1877 = vld [vmem:[%s678] sm:$0xf]
        %v1878 = vld [vmem:[%s678 + $0x4] sm:$0xf]
        %v1879 = vld [vmem:[%s678 + $0x8] sm:$0xf]
        %v1880 = vld [vmem:[%s678 + $0xc] sm:$0xf]
        %v1881 = vld [vmem:[%s678 + $0x10] sm:$0xf]
        %v1882 = vld [vmem:[%s678 + $0x14] sm:$0xf]
        %v1883 = vld [vmem:[%s678 + $0x18] sm:$0xf]
        %v1884 = vld [vmem:[%s678 + $0x1c] sm:$0xf]
        %v1885 = vld [vmem:[%s681] sm:$0x1]
        %v1887 = vlaneseq
        %v1888 = vshrl.u32 %v1887, 7
        %v1889 = vsub.s32 0, %v1888
        %v1890 = vrot.slane %v1885, %v1889
        %v1900 = vunpack.c.l.b16 %v1877
        %v1901 = vunpack.c.l.b16 %v1878
        %v1902 = vunpack.c.l.b16 %v1879
        %v1903 = vunpack.c.l.b16 %v1880
        %v1904 = vunpack.c.l.b16 %v1881
        %v1905 = vunpack.c.l.b16 %v1882
        %v1906 = vunpack.c.l.b16 %v1883
        %v1907 = vunpack.c.l.b16 %v1884
        %v1908 = vpack.c.b16 %v1901, %v1900
        %v1909 = vpack.c.b16 %v1903, %v1902
        %v1910 = vpack.c.b16 %v1905, %v1904
        %v1911 = vpack.c.b16 %v1907, %v1906
        %vm1916 = vcmask 523264
        %v1918 = vsel %vm1916, %v1876, 0
        %1920 = vmatprep.subr.bf16.mxu0 0
        %1921 = vmatpush1.bf16.msra.mxu0 %v1908
        %1922 = vmatprep.subr.bf16.mxu0 0
        %1923 = vmatpush1.bf16.msra.mxu0 %v1909
        %1924 = vmatprep.subr.bf16.mxu0 0
        %1925 = vmatpush1.bf16.msra.mxu0 %v1910
        %1926 = vmatprep.subr.bf16.mxu0 0
        %1927 = vmatpush1.bf16.msra.mxu0 %v1911
        %1928 = vmatprep.subr.bf16.mxu0 0
        %1929 = vmatpush1.bf16.msra.mxu0 0
        %1930 = vmatprep.subr.bf16.mxu0 0
        %1931 = vmatpush1.bf16.msra.mxu0 0
        %1932 = vmatprep.subr.bf16.mxu0 0
        %1933 = vmatpush1.bf16.msra.mxu0 0
        %1934 = vmatprep.subr.bf16.mxu0 0
        %1935 = vmatpush1.bf16.msra.mxu0 0
        %1936 = vmatprep.subr.bf16.mxu0 0
        %1937 = vmatpush1.bf16.msra.mxu0 0
        %1938 = vmatprep.subr.bf16.mxu0 0
        %1939 = vmatpush1.bf16.msra.mxu0 0
        %1940 = vmatprep.subr.bf16.mxu0 0
        %1941 = vmatpush1.bf16.msra.mxu0 0
        %1942 = vmatprep.subr.bf16.mxu0 0
        %1943 = vmatpush1.bf16.msra.mxu0 0
        %1944 = vmatprep.subr.bf16.mxu0 0
        %1945 = vmatpush1.bf16.msra.mxu0 0
        %1946 = vmatprep.subr.bf16.mxu0 0
        %1947 = vmatpush1.bf16.msra.mxu0 0
        %1948 = vmatprep.subr.bf16.mxu0 0
        %1949 = vmatpush1.bf16.msra.mxu0 0
        %1950 = vmatprep.subr.bf16.mxu0 0
        %1951 = vmatpush1.bf16.msra.mxu0 0
        %1952 = vmatprep.mubr.bf16.mxu0 0
        %1953 = vmatmul.mubr.bf16.gmra.mrb[0].mxu0 %v1918
        %v1954 = vpop.f32.mrb[0].mxu0
        %v1955 = vadd.f32 %v1890, %v1954
        %v1956 = vpop.f32.mrb[0].mxu0
        %v1957 = vpop.f32.mrb[0].mxu0
        %v1958 = vadd.f32 %v1890, %v1957
        %v1959 = vpop.f32.mrb[0].mxu0
        %1960 = vdwg.mxu0
        %v1961 = vadd.f32 %v1955, %v1804
        %v1962 = vadd.f32 %v1958, %v1805
        %v1963 = vld [vmem:[%s684] sm:$0x1]
        %v1964 = vld [vmem:[%s687] sm:$0x1]
        %v1965 = vsel %vm724, %v1961, 0.0
        %1966 = vadd.xlane.f32.xlu0 %v1965
        %v1967 = vpop.xlane.xlu0 %1966
        %v1968 = vsel %vm724, %v1962, 0.0
        %1969 = vadd.xlane.f32.xlu0 %v1968
        %v1970 = vpop.xlane.xlu0 %1969
        %v1971 = vmul.f32 %v1967, %v1769
        %v1972 = vmul.f32 %v1970, %v1769
        %v1973 = vsub.f32 %v1961, %v1971
        %v1974 = vsub.f32 %v1962, %v1972
        %v1975 = vmul.f32 %v1973, %v1973
        %v1976 = vmul.f32 %v1974, %v1974
        %v1977 = vsel %vm724, %v1975, 0.0
        %1978 = vadd.xlane.f32.xlu0 %v1977
        %v1979 = vpop.xlane.xlu0 %1978
        %v1980 = vsel %vm724, %v1976, 0.0
        %1981 = vadd.xlane.f32.xlu0 %v1980
        %v1982 = vpop.xlane.xlu0 %1981
        %v1983 = vmul.f32 %v1979, %v1769
        %v1984 = vmul.f32 %v1982, %v1769
        %v1985 = vadd.f32 %v1983, 1e-05
        %v1986 = vadd.f32 %v1984, 1e-05
        %v1987 = vrsqrt.pop %v1985
        %v1988 = vrsqrt.pop %v1986
        %v1989 = vmul.f32 %v1973, %v1987
        %v1990 = vmul.f32 %v1974, %v1988
        %v1992 = vlaneseq
        %v1993 = vshrl.u32 %v1992, 7
        %v1994 = vsub.s32 0, %v1993
        %v1995 = vrot.slane %v1963, %v1994
        %v1997 = vmul.f32 %v1989, %v1995
        %v1998 = vmul.f32 %v1990, %v1995
        %v2000 = vlaneseq
        %v2001 = vshrl.u32 %v2000, 7
        %v2002 = vsub.s32 0, %v2001
        %v2003 = vrot.slane %v1964, %v2002
        %v2005 = vadd.f32 %v1997, %v2003
        %v2006 = vadd.f32 %v1998, %v2003
        %2007 = vst.msk [vmem:[#allocation11] sm:$0xff] %vm724, %v2005
        %2008 = vst.msk [vmem:[#allocation11 + $0x8] sm:$0xff] %vm724, %v2006
        // Predicated region
        $region97: #{tpu_custom_call.1} parent=71 // pred_check
          %p2009 = pneg %p378
        $region98: #{tpu_custom_call.1} parent=71 // pred_check_branch
          %2011 = sbr.rel (%p2009) target = $region100
        $region99: #{tpu_custom_call.1} parent=71 // pred_region
          %s2013 = ssub.s32 256, 256
          %2014 = vsyncadd [#allocation4], %s2013
          %s2015 = sshll.u32 [#allocation11], 4
          %s2016 = int_to_ptr.vmem [resolvable:$true] %s2015
          %2021 = dma.vmem_to_hbm [thread:$0]  %s2016, 256, %s13, [#allocation4], 128, 128, 8
        $region100: #{tpu_custom_call.1} parent=71 // pred_fallthru
          _
        // Predicated region
        $region101: #{tpu_custom_call.1} parent=71 // pred_check
          %p2022 = pneg %p378
        $region102: #{tpu_custom_call.1} parent=71 // pred_check_branch
          %2024 = sbr.rel (%p2022) target = $region104
        $region103: #{tpu_custom_call.1} parent=71 // pred_region
          %2025 = dma.done [#allocation4], 256
        $region104: #{tpu_custom_call.1} parent=71 // pred_fallthru
          _
      $region72: #{tpu_custom_call.1} parent=5 // pred_fallthru
        _
      %p2026 = scmp.le.s32.totalorder 2, %s27
      // Predicated region
      $region105: #{tpu_custom_call.1} parent=5 // pred_check
        %p2027 = pneg %p2026
      $region106: #{tpu_custom_call.1} parent=5 // pred_check_branch
        %2029 = sbr.rel (%p2027) target = $region108
      $region107: #{tpu_custom_call.1} parent=5 // pred_region
        %s2030 = ssub.s32 %s27, 2
      $region108: #{tpu_custom_call.1} parent=5 // pred_fallthru
        _
    $region6: #{tpu_custom_call.1} parent=1 // loop_footer
      %s31 = sadd.s32 1, %s27
    $region7: #{tpu_custom_call.1} parent=1 // loop_footer_branch
      %26 = sbr.rel target = $region3
    $region8: #{tpu_custom_call.1} parent=1 // loop_exit
      _
    %2031 = vsyncpa [#allocation3], 1
    %s2032 = scalar_lea.sflag [#allocation3], 1
    %2033 = vsyncpa %s2032, 1
    %2034 = vsyncpa [#allocation6], 1
    %s2035 = scalar_lea.sflag [#allocation6], 1
    %2036 = vsyncpa %s2035, 1
    %2037 = vsyncpa [#allocation9], 1
    %s2038 = scalar_lea.sflag [#allocation9], 1
    %2039 = vsyncpa %s2038, 1
    %2040 = vsyncpa [#allocation4], 1
    %s2041 = scalar_lea.sflag [#allocation4], 1
    %2042 = vsyncpa %s2041, 1

</llo_original>
